<compile_context>
chip_gen: v6e
topology: v6e:2x2x1
jax: 0.10.0
libtpu: 0.0.40
codegen_flags: <defaults>
</compile_context>

<pallas_src>
import functools
import math

import jax
import jax.numpy as jnp
from jax import lax
from jax.experimental import pallas as pl
from jax.experimental.pallas import tpu as pltpu


def _round_up(x, m):
    return (x + m - 1) // m * m


# ----------------------------- fused Pallas kernel ---------------------------

def _fused_encoder_kernel(cols_ref, w1_ref, w2_ref, wl_ref, bias_ref, o_ref, *,
                          xscale, eps, n2, d):
    """Whole BaseEncoder forward for one (b, t2) row tile.

    cols_ref : (tm, K1)  bf16  im2col rows (b,t2); cols ordered (f2, tap, k1),
                               plus a ones column carrying the conv1 bias
    w1_ref   : (K1, N1)  bf16  block-diagonal conv1 weight (+ conv1-bias row)
    w2_ref   : (N1, N2)  bf16  block-diagonal (over f2) conv2 weight, rows (p, c)
    wl_ref   : (N2, D)   bf16  linear weight regrouped to rows (f2, c)
    bias_ref : (8, BW)   f32   row0: conv2_b tiled over f2 (width n2)
                               row1: lin_b, row2: ln_gamma, row3: ln_beta (width d)
    o_ref    : (tm, D)   f32
    """
    # ---- conv1 (+bias via ones column) + ReLU: ONE matmul over all taps -----
    h1 = jnp.dot(cols_ref[...], w1_ref[...], preferred_element_type=jnp.float32)
    h1 = jnp.maximum(h1, 0.0)

    # ---- conv2 + bias + ReLU: ONE matmul (block-diagonal over f2) ------------
    h2 = jnp.dot(h1.astype(jnp.bfloat16), w2_ref[...],
                 preferred_element_type=jnp.float32) + bias_ref[0:1, :n2]
    h2 = jnp.maximum(h2, 0.0)

    # ---- Linear(D*F2 -> D) + bias, then x*sqrt(D) (pos-enc xscale) -----------
    y = jnp.dot(h2.astype(jnp.bfloat16), wl_ref[...],
                preferred_element_type=jnp.float32) + bias_ref[1:2, :d]
    y = y * xscale

    # ---- after_norm: LayerNorm(D, eps=1e-12), f32 elementwise ----------------
    mean = jnp.mean(y, axis=-1, keepdims=True)
    var = jnp.mean(jnp.square(y - mean), axis=-1, keepdims=True)
    yn = (y - mean) * lax.rsqrt(var + eps)
    o_ref[...] = (yn * bias_ref[2:3, :d] + bias_ref[3:4, :d]).astype(o_ref.dtype)


# ------------------------------ parameter packing -----------------------------

def init_base_encoder_params(key, d_model, freq_after_sub):
    """Deterministic synthetic parameters matching the module's shapes."""
    k1, k2, k3, k4, k5, k6, k7, k8 = jax.random.split(key, 8)
    s1 = 1.0 / math.sqrt(1 * 3 * 3)
    s2 = 1.0 / math.sqrt(d_model * 3 * 3)
    s3 = 1.0 / math.sqrt(d_model * freq_after_sub)
    return {
        "conv1_w": jax.random.uniform(k1, (d_model, 1, 3, 3), jnp.float32, -s1, s1),
        "conv1_b": jax.random.uniform(k2, (d_model,), jnp.float32, -s1, s1),
        "conv2_w": jax.random.uniform(k3, (d_model, d_model, 3, 3), jnp.float32, -s2, s2),
        "conv2_b": jax.random.uniform(k4, (d_model,), jnp.float32, -s2, s2),
        "lin_w": jax.random.uniform(k5, (d_model * freq_after_sub, d_model),
                                    jnp.float32, -s3, s3),
        "lin_b": jax.random.uniform(k6, (d_model,), jnp.float32, -s3, s3),
        "ln_gamma": jnp.ones((d_model,), jnp.float32)
        + 0.01 * jax.random.normal(k7, (d_model,), jnp.float32),
        "ln_beta": 0.01 * jax.random.normal(k8, (d_model,), jnp.float32),
    }


def pack_encoder_params(params, *, d_model, f2):
    """One-time host-side repack into MXU-friendly block-diagonal bf16 weights.

    stride == kernel == 3 for both convs => each conv1 output position feeds
    exactly one conv2 tap, so the whole conv path factors into two dense
    matmuls with block-diagonal weights (zero blocks cost MXU idle lanes that
    would be idle anyway at K=9/32).
    """
    D = d_model
    k_data = f2 * 81                       # im2col columns (f2, tap, k1)
    K1 = _round_up(k_data + 1, 128)        # +1 ones column carrying conv1 bias
    N1 = f2 * 9 * D                        # conv1 outputs, lanes (f2, tap, c)
    N2 = f2 * D                            # conv2 outputs, lanes (f2, c)
    BW = _round_up(max(N2, D, 128), 128)

    # conv1: (kh1*3+kw1, out_ch)
    w1m = params["conv1_w"].reshape(D, 9).T                               # (9, D)
    w1_bd = jnp.kron(jnp.eye(f2 * 9, dtype=jnp.float32), w1m)            # (f2*81, N1)
    b1_row = jnp.tile(params["conv1_b"].reshape(1, D), (1, f2 * 9))      # (1, N1)
    w1_bd = jnp.concatenate(
        [w1_bd, b1_row, jnp.zeros((K1 - k_data - 1, N1), jnp.float32)], axis=0)

    # conv2: rows ordered (tap p, in_ch c) -> cols out_ch
    w2_full = params["conv2_w"].transpose(2, 3, 1, 0).reshape(9 * D, D)   # (9D, D)
    w2_bd = jnp.kron(jnp.eye(f2, dtype=jnp.float32), w2_full)             # (N1, N2)

    # reference flattens conv2 output with feature index c*F2 + f2 -> regroup rows (f2, c)
    wl = params["lin_w"].reshape(D, f2, D).transpose(1, 0, 2).reshape(N2, D)

    # all remaining per-feature vectors in ONE (8, BW) slab (one sublane group)
    bias_pack = jnp.zeros((8, BW), jnp.float32)
    bias_pack = bias_pack.at[0, :N2].set(jnp.tile(params["conv2_b"], f2))
    bias_pack = bias_pack.at[1, :D].set(params["lin_b"])
    bias_pack = bias_pack.at[2, :D].set(params["ln_gamma"])
    bias_pack = bias_pack.at[3, :D].set(params["ln_beta"])

    return {
        "w1_bd": w1_bd.astype(jnp.bfloat16),
        "w2_bd": w2_bd.astype(jnp.bfloat16),
        "wl": wl.astype(jnp.bfloat16),
        "bias_pack": bias_pack,
    }


# ------------------------------ BaseEncoder forward ---------------------------

def base_encoder_forward(packed, xs, *, d_model=32, strides=(3, 3)):
    """xs: (B, T, F) float32  ->  (B, T2, d_model) float32 (eval mode)."""
    assert strides == (3, 3), "fast path assumes stride == kernel == 3 for both convs"
    B, T, F = xs.shape
    D = d_model
    T1 = (T - 3) // 3 + 1
    F1 = (F - 3) // 3 + 1
    T2 = (T1 - 3) // 3 + 1
    F2 = (F1 - 3) // 3 + 1

    k_data = F2 * 81
    K1 = _round_up(k_data + 1, 128)
    N1 = F2 * 9 * D
    N2 = F2 * D
    assert packed["w1_bd"].shape == (K1, N1)
    assert packed["w2_bd"].shape == (N1, N2)
    assert packed["wl"].shape == (N2, D)
    BW = packed["bias_pack"].shape[1]
    assert N2 <= BW and D <= BW

    m1 = B * T2                                   # (b, t2) rows
    tile_m = 128 if m1 >= 128 else _round_up(m1, 8)
    m1_pad = _round_up(m1, tile_m)

    # host-side im2col: pure slice/reshape/transpose (stride==kernel -> no overlap)
    # rows (b, t2); cols (f2, kh2, kw2, kh1, kw1) = (f2, tap, k1)
    xc = xs[:, :9 * T2, :9 * F2].reshape(B, T2, 3, 3, F2, 3, 3)
    cols = xc.transpose(0, 1, 4, 2, 5, 3, 6).reshape(m1, k_data)
    cols = jnp.concatenate(
        [cols, jnp.ones((m1, 1), jnp.float32),
         jnp.zeros((m1, K1 - k_data - 1), jnp.float32)], axis=1)
    cols = jnp.pad(cols, ((0, m1_pad - m1), (0, 0))).astype(jnp.bfloat16)
    # TODO(synk): at realistic B/T, avoid materializing the im2col in HBM
    # (allow_input_fusion or memory_space=pl.ANY + in-kernel unpack), pack 4
    # rows per 128-lane output row for v5e store density, and re-derive tile_m
    # per generation (v7x 64 MiB VMEM wants ~2-4K rows; v6e/v5e can go larger).

    kernel = functools.partial(_fused_encoder_kernel,
                               xscale=math.sqrt(D), eps=1e-12, n2=N2, d=D)

    out = pl.pallas_call(
        kernel,
        out_shape=jax.ShapeDtypeStruct((m1_pad, D), jnp.float32),
        grid=(m1_pad // tile_m,),
        in_specs=[
            pl.BlockSpec((tile_m, K1), lambda i: (i, 0)),   # row-tiled activations
            pl.BlockSpec((K1, N1), lambda i: (0, 0)),        # weights stay resident
            pl.BlockSpec((N1, N2), lambda i: (0, 0)),
            pl.BlockSpec((N2, D), lambda i: (0, 0)),
            pl.BlockSpec((8, BW), lambda i: (0, 0)),
        ],
        out_specs=pl.BlockSpec((tile_m, D), lambda i: (i, 0)),
        compiler_params=pltpu.CompilerParams(
            dimension_semantics=("parallel",)),
    )(cols, packed["w1_bd"], packed["w2_bd"], packed["wl"], packed["bias_pack"])

    return out[:m1].reshape(B, T2, D)


# ----------------------------- plain-JAX references ---------------------------

def _reference_forward(params, xs, *, d_model, strides, mm_dtype=jnp.float32):
    """Reference. mm_dtype=bfloat16 mirrors the kernel's MXU-operand rounding
    (f32 accumulation); mm_dtype=float32 is the exact-precision path."""
    c = lambda a: a.astype(mm_dtype)
    prec = lax.Precision.HIGHEST if mm_dtype == jnp.float32 else lax.Precision.DEFAULT
    x = xs[:, None, :, :]                                            # (B,1,T,F)
    x = lax.conv_general_dilated(c(x), c(params["conv1_w"]),
                                 (strides[0], strides[0]), "VALID",
                                 dimension_numbers=("NCHW", "OIHW", "NCHW"),
                                 precision=prec, preferred_element_type=jnp.float32)
    # kernel folds conv1_b into the bf16 weight -> mirror that rounding
    b1 = params["conv1_b"].astype(mm_dtype).astype(jnp.float32)
    x = jnp.maximum(x + b1[None, :, None, None], 0.0)
    x = lax.conv_general_dilated(c(x), c(params["conv2_w"]),
                                 (strides[1], strides[1]), "VALID",
                                 dimension_numbers=("NCHW", "OIHW", "NCHW"),
                                 precision=prec, preferred_element_type=jnp.float32)
    x = jnp.maximum(x + params["conv2_b"][None, :, None, None], 0.0)
    B, D, T2, F2 = x.shape
    x = x.transpose(0, 2, 1, 3).reshape(B * T2, D * F2)
    x = (jnp.dot(c(x), c(params["lin_w"]), precision=prec,
                 preferred_element_type=jnp.float32)
         + params["lin_b"]) * math.sqrt(d_model)
    mean = jnp.mean(x, axis=-1, keepdims=True)
    var = jnp.mean(jnp.square(x - mean), axis=-1, keepdims=True)
    x = (x - mean) * lax.rsqrt(var + 1e-12)
    x = x * params["ln_gamma"] + params["ln_beta"]
    return x.reshape(B, T2, D)


# ----------------------------------- main ------------------------------------

if __name__ == "__main__":
    B, T, F = 2, 30, 30          # input_size = (30, 30)
    d_model = 32                 # output_size
    strides = (3, 3)

    # subsampled sizes: (30-3)//3+1 = 10 ; (10-3)//3+1 = 3
    T1 = (T - 3) // strides[0] + 1
    F1 = (F - 3) // strides[0] + 1
    T2 = (T1 - 3) // strides[1] + 1
    F2 = (F1 - 3) // strides[1] + 1

    key = jax.random.PRNGKey(0)
    k_in, k_par = jax.random.split(key)
    xs = jax.random.normal(k_in, (B, T, F), jnp.float32)
    params = init_base_encoder_params(k_par, d_model, F2)
    packed = pack_encoder_params(params, d_model=d_model, f2=F2)

    forward = jax.jit(functools.partial(base_encoder_forward,
                                        d_model=d_model, strides=strides))
    out = jax.block_until_ready(forward(packed, xs))
    assert out.shape == (B, T2, d_model), out.shape
    assert bool(jnp.all(jnp.isfinite(out)))

    # tight check vs matched-precision (bf16 MXU operands, f32 accumulation) reference
    ref_bf = _reference_forward(params, xs, d_model=d_model, strides=strides,
                                mm_dtype=jnp.bfloat16)
    err_bf = float(jnp.max(jnp.abs(out - ref_bf)))
    assert jnp.allclose(out, ref_bf, rtol=2e-3, atol=2e-3), err_bf

    # loose sanity check vs full-f32 reference (bounds the bf16-operand error)
    ref_f32 = _reference_forward(params, xs, d_model=d_model, strides=strides,
                                 mm_dtype=jnp.float32)
    err_f32 = float(jnp.max(jnp.abs(out - ref_f32)))
    assert jnp.allclose(out, ref_f32, rtol=5e-2, atol=5e-2), err_f32

    print("KERNEL_OK")
</pallas_src>

<mosaic_0001>
module attributes {stable_mosaic.version = 11 : i64} {
  func.func @_fused_encoder_kernel(%arg0: i32, %arg1: memref<8x256xbf16, #tpu.memory_space<vmem>>, %arg2: memref<256x864xbf16, #tpu.memory_space<vmem>>, %arg3: memref<864x96xbf16, #tpu.memory_space<vmem>>, %arg4: memref<96x32xbf16, #tpu.memory_space<vmem>>, %arg5: memref<8x128xf32, #tpu.memory_space<vmem>>, %arg6: memref<8x32xf32, #tpu.memory_space<vmem>>) attributes {dimension_semantics = [#tpu.dimension_semantics<parallel>], iteration_bounds = array<i64: 1>, scalar_prefetch = 0 : i64, scratch_operands = 0 : i64, tpu.core_type = #tpu.core_type<tc>, window_params = [{transform_indices = @transform_0, window_bounds = array<i64: 8, 256>}, {pipeline_mode = #tpu.pipeline_mode<synchronous>, transform_indices = @transform_1, window_bounds = array<i64: 256, 864>}, {pipeline_mode = #tpu.pipeline_mode<synchronous>, transform_indices = @transform_2, window_bounds = array<i64: 864, 96>}, {pipeline_mode = #tpu.pipeline_mode<synchronous>, transform_indices = @transform_3, window_bounds = array<i64: 96, 32>}, {pipeline_mode = #tpu.pipeline_mode<synchronous>, transform_indices = @transform_4, window_bounds = array<i64: 8, 128>}, {transform_indices = @transform_5, window_bounds = array<i64: 8, 32>}]} {
    %c0 = arith.constant 0 : index
    %c0_0 = arith.constant 0 : index
    %0 = vector.load %arg1[%c0, %c0_0] : memref<8x256xbf16, #tpu.memory_space<vmem>>, vector<8x256xbf16>
    %c0_1 = arith.constant 0 : index
    %c0_2 = arith.constant 0 : index
    %1 = vector.load %arg2[%c0_1, %c0_2] : memref<256x864xbf16, #tpu.memory_space<vmem>>, vector<256x864xbf16>
    %cst = arith.constant dense<0.000000e+00> : vector<8x864xf32>
    %2 = tpu.matmul %0, %1, %cst {dimension_numbers = #tpu.dot_dimension_numbers<[1], [0], [0], [1], [0, 0, 1, 1], [], []>} : vector<8x256xbf16>, vector<256x864xbf16>, vector<8x864xf32> -> vector<8x864xf32>
    %cst_3 = arith.constant 0.000000e+00 : f32
    %3 = vector.broadcast %cst_3 : f32 to vector<8x864xf32>
    %4 = arith.maximumf %2, %3 : vector<8x864xf32>
    %5 = arith.truncf %4 : vector<8x864xf32> to vector<8x864xbf16>
    %c0_4 = arith.constant 0 : index
    %c0_5 = arith.constant 0 : index
    %6 = vector.load %arg3[%c0_4, %c0_5] : memref<864x96xbf16, #tpu.memory_space<vmem>>, vector<864x96xbf16>
    %cst_6 = arith.constant dense<0.000000e+00> : vector<8x96xf32>
    %7 = tpu.matmul %5, %6, %cst_6 {dimension_numbers = #tpu.dot_dimension_numbers<[1], [0], [0], [1], [0, 0, 1, 1], [], []>} : vector<8x864xbf16>, vector<864x96xbf16>, vector<8x96xf32> -> vector<8x96xf32>
    %c0_7 = arith.constant 0 : index
    %c0_8 = arith.constant 0 : index
    %8 = vector.load %arg5[%c0_7, %c0_8] : memref<8x128xf32, #tpu.memory_space<vmem>>, vector<1x96xf32>
    %9 = vector.broadcast %8 : vector<1x96xf32> to vector<8x96xf32>
    %10 = arith.addf %7, %9 : vector<8x96xf32>
    %cst_9 = arith.constant 0.000000e+00 : f32
    %11 = vector.broadcast %cst_9 : f32 to vector<8x96xf32>
    %12 = arith.maximumf %10, %11 : vector<8x96xf32>
    %13 = arith.truncf %12 : vector<8x96xf32> to vector<8x96xbf16>
    %c0_10 = arith.constant 0 : index
    %c0_11 = arith.constant 0 : index
    %14 = vector.load %arg4[%c0_10, %c0_11] : memref<96x32xbf16, #tpu.memory_space<vmem>>, vector<96x32xbf16>
    %cst_12 = arith.constant dense<0.000000e+00> : vector<8x32xf32>
    %15 = tpu.matmul %13, %14, %cst_12 {dimension_numbers = #tpu.dot_dimension_numbers<[1], [0], [0], [1], [0, 0, 1, 1], [], []>} : vector<8x96xbf16>, vector<96x32xbf16>, vector<8x32xf32> -> vector<8x32xf32>
    %c1 = arith.constant 1 : index
    %c0_13 = arith.constant 0 : index
    %16 = vector.load %arg5[%c1, %c0_13] : memref<8x128xf32, #tpu.memory_space<vmem>>, vector<1x32xf32>
    %17 = vector.broadcast %16 : vector<1x32xf32> to vector<8x32xf32>
    %18 = arith.addf %15, %17 : vector<8x32xf32>
    %cst_14 = arith.constant 5.65685415 : f32
    %19 = vector.broadcast %cst_14 : f32 to vector<8x32xf32>
    %20 = arith.mulf %18, %19 : vector<8x32xf32>
    %cst_15 = arith.constant dense<0.000000e+00> : vector<8xf32>
    %21 = vector.multi_reduction <add>, %20, %cst_15 [1] : vector<8x32xf32> to vector<8xf32>
    %22 = vector.shape_cast %21 : vector<8xf32> to vector<8x1xf32>
    %cst_16 = arith.constant 3.200000e+01 : f32
    %23 = vector.broadcast %cst_16 : f32 to vector<8x1xf32>
    %24 = arith.divf %22, %23 : vector<8x1xf32>
    %25 = vector.broadcast %24 : vector<8x1xf32> to vector<8x32xf32>
    %26 = arith.subf %20, %25 : vector<8x32xf32>
    %27 = arith.mulf %26, %26 : vector<8x32xf32>
    %cst_17 = arith.constant dense<0.000000e+00> : vector<8xf32>
    %28 = vector.multi_reduction <add>, %27, %cst_17 [1] : vector<8x32xf32> to vector<8xf32>
    %29 = vector.shape_cast %28 : vector<8xf32> to vector<8x1xf32>
    %cst_18 = arith.constant 3.200000e+01 : f32
    %30 = vector.broadcast %cst_18 : f32 to vector<8x1xf32>
    %31 = arith.divf %29, %30 : vector<8x1xf32>
    %32 = vector.broadcast %24 : vector<8x1xf32> to vector<8x32xf32>
    %33 = arith.subf %20, %32 : vector<8x32xf32>
    %cst_19 = arith.constant 9.99999996E-13 : f32
    %34 = vector.broadcast %cst_19 : f32 to vector<8x1xf32>
    %35 = arith.addf %31, %34 : vector<8x1xf32>
    %36 = math.rsqrt %35 : vector<8x1xf32>
    %37 = vector.broadcast %36 : vector<8x1xf32> to vector<8x32xf32>
    %38 = arith.mulf %33, %37 : vector<8x32xf32>
    %c2 = arith.constant 2 : index
    %c0_20 = arith.constant 0 : index
    %39 = vector.load %arg5[%c2, %c0_20] : memref<8x128xf32, #tpu.memory_space<vmem>>, vector<1x32xf32>
    %40 = vector.broadcast %39 : vector<1x32xf32> to vector<8x32xf32>
    %41 = arith.mulf %38, %40 : vector<8x32xf32>
    %c3 = arith.constant 3 : index
    %c0_21 = arith.constant 0 : index
    %42 = vector.load %arg5[%c3, %c0_21] : memref<8x128xf32, #tpu.memory_space<vmem>>, vector<1x32xf32>
    %43 = vector.broadcast %42 : vector<1x32xf32> to vector<8x32xf32>
    %44 = arith.addf %41, %43 : vector<8x32xf32>
    %c0_22 = arith.constant 0 : index
    %c0_23 = arith.constant 0 : index
    %45 = vector.load %arg6[%c0_22, %c0_23] : memref<8x32xf32, #tpu.memory_space<vmem>>, vector<8x32xf32>
    tpu.vector_store %arg6[%c0_22, %c0_23], %44 {strides = array<i32>} : memref<8x32xf32, #tpu.memory_space<vmem>>, vector<8x32xf32>,
    return
  }
  func.func @transform_0(%arg0: i32) -> (i32, i32) {
    %c0_i32 = arith.constant 0 : i32
    %c0_i32_0 = arith.constant 0 : i32
    return %arg0, %c0_i32 : i32, i32
  }
  func.func @transform_1(%arg0: i32) -> (i32, i32) {
    %c0_i32 = arith.constant 0 : i32
    %c0_i32_0 = arith.constant 0 : i32
    %c0_i32_1 = arith.constant 0 : i32
    return %c0_i32, %c0_i32_0 : i32, i32
  }
  func.func @transform_2(%arg0: i32) -> (i32, i32) {
    %c0_i32 = arith.constant 0 : i32
    %c0_i32_0 = arith.constant 0 : i32
    %c0_i32_1 = arith.constant 0 : i32
    return %c0_i32, %c0_i32_0 : i32, i32
  }
  func.func @transform_3(%arg0: i32) -> (i32, i32) {
    %c0_i32 = arith.constant 0 : i32
    %c0_i32_0 = arith.constant 0 : i32
    %c0_i32_1 = arith.constant 0 : i32
    return %c0_i32, %c0_i32_0 : i32, i32
  }
  func.func @transform_4(%arg0: i32) -> (i32, i32) {
    %c0_i32 = arith.constant 0 : i32
    %c0_i32_0 = arith.constant 0 : i32
    %c0_i32_1 = arith.constant 0 : i32
    return %c0_i32, %c0_i32_0 : i32, i32
  }
  func.func @transform_5(%arg0: i32) -> (i32, i32) {
    %c0_i32 = arith.constant 0 : i32
    %c0_i32_0 = arith.constant 0 : i32
    return %arg0, %c0_i32 : i32, i32
  }
}

</mosaic_0001>

<llo_original>
// kernel: base_encoder_forward.1
$region0: #{base_encoder_forward.1}
  #allocation0 [shape = 'u32[]', space=smem, size = 0x4, offset = 0x4, fixed_abs, tag = 'smem constant byte address 0x4 - core index']
  #allocation1 [shape = 'u32[144,128]{1,0:T(1,128)}', space=vmem, size = 0x12000, scoped, tag = 'internal scratch']
  %s0 = inlined_call_operand.vmem [shape: bf16[8,256], index: 0, kind: input, shape index: {}]
  %s1 = inlined_call_operand.vmem [shape: bf16[256,864], index: 1, kind: input, shape index: {}]
  %s2 = inlined_call_operand.vmem [shape: bf16[864,96], index: 2, kind: input, shape index: {}]
  %s3 = inlined_call_operand.vmem [shape: bf16[96,32], index: 3, kind: input, shape index: {}]
  %s4 = inlined_call_operand.vmem [shape: f32[8,128], index: 4, kind: input, shape index: {}]
  %s5 = inlined_call_operand.vmem [shape: f32[8,32], index: 5, kind: output, shape index: {}]
  %s6 = sld [smem:[#allocation0]]
  $region30: #{base_encoder_forward.1} parent=0
    _
  %s8 = ssub.s32 1, %s6
  %s9 = scalar_select 0, %s8, %s6
  // Predicated region
  $region2: #{base_encoder_forward.1} parent=0 // pred_check
    _
  $region3: #{base_encoder_forward.1} parent=0 // pred_check_branch
    %11 = sbr.rel (0) target = $region5
  $region4: #{base_encoder_forward.1} parent=0 // pred_region
    _
  $region5: #{base_encoder_forward.1} parent=0 // pred_fallthru
    _
  // Predicated region
  $region6: #{base_encoder_forward.1} parent=0 // pred_check
    _
  $region7: #{base_encoder_forward.1} parent=0 // pred_check_branch
    %13 = sbr.rel (0) target = $region9
  $region8: #{base_encoder_forward.1} parent=0 // pred_region
    _
  $region9: #{base_encoder_forward.1} parent=0 // pred_fallthru
    _
  // Predicated region
  $region10: #{base_encoder_forward.1} parent=0 // pred_check
    _
  $region11: #{base_encoder_forward.1} parent=0 // pred_check_branch
    %15 = sbr.rel (0) target = $region13
  $region12: #{base_encoder_forward.1} parent=0 // pred_region
    _
  $region13: #{base_encoder_forward.1} parent=0 // pred_fallthru
    _
  // Predicated region
  $region14: #{base_encoder_forward.1} parent=0 // pred_check
    _
  $region15: #{base_encoder_forward.1} parent=0 // pred_check_branch
    %17 = sbr.rel (0) target = $region17
  $region16: #{base_encoder_forward.1} parent=0 // pred_region
    _
  $region17: #{base_encoder_forward.1} parent=0 // pred_fallthru
    _
  // Predicated region
  $region18: #{base_encoder_forward.1} parent=0 // pred_check
    _
  $region19: #{base_encoder_forward.1} parent=0 // pred_check_branch
    %19 = sbr.rel (0) target = $region21
  $region20: #{base_encoder_forward.1} parent=0 // pred_region
    _
  $region21: #{base_encoder_forward.1} parent=0 // pred_fallthru
    _
  %v21 = vld [vmem:[%s0] sm:$0xff]
  %v22 = vld [vmem:[%s1] sm:$0xff]
  %v23 = vld [vmem:[%s1 + $0x8] sm:$0xff]
  %v24 = vld [vmem:[%s1 + $0x10] sm:$0xff]
  %v25 = vld [vmem:[%s1 + $0x18] sm:$0xf]
  %v26 = vld [vmem:[%s1 + $0x1c] sm:$0xff]
  %v27 = vld [vmem:[%s1 + $0x24] sm:$0xff]
  %v28 = vld [vmem:[%s1 + $0x2c] sm:$0xff]
  %v29 = vld [vmem:[%s1 + $0x34] sm:$0xf]
  %v30 = vld [vmem:[%s1 + $0x38] sm:$0xff]
  %v31 = vld [vmem:[%s1 + $0x40] sm:$0xff]
  %v32 = vld [vmem:[%s1 + $0x48] sm:$0xff]
  %v33 = vld [vmem:[%s1 + $0x50] sm:$0xf]
  %v34 = vld [vmem:[%s1 + $0x54] sm:$0xff]
  %v35 = vld [vmem:[%s1 + $0x5c] sm:$0xff]
  %v36 = vld [vmem:[%s1 + $0x64] sm:$0xff]
  %v37 = vld [vmem:[%s1 + $0x6c] sm:$0xf]
  %v38 = vld [vmem:[%s1 + $0x70] sm:$0xff]
  %v39 = vld [vmem:[%s1 + $0x78] sm:$0xff]
  %v40 = vld [vmem:[%s1 + $0x80] sm:$0xff]
  %v41 = vld [vmem:[%s1 + $0x88] sm:$0xf]
  %v42 = vld [vmem:[%s1 + $0x8c] sm:$0xff]
  %v43 = vld [vmem:[%s1 + $0x94] sm:$0xff]
  %v44 = vld [vmem:[%s1 + $0x9c] sm:$0xff]
  %v45 = vld [vmem:[%s1 + $0xa4] sm:$0xf]
  %v46 = vld [vmem:[%s1 + $0xa8] sm:$0xff]
  %v47 = vld [vmem:[%s1 + $0xb0] sm:$0xff]
  %v48 = vld [vmem:[%s1 + $0xb8] sm:$0xff]
  %v49 = vld [vmem:[%s1 + $0xc0] sm:$0xf]
  %v50 = vld [vmem:[%s1 + $0xc4] sm:$0xff]
  %v51 = vld [vmem:[%s1 + $0xcc] sm:$0xff]
  %v52 = vld [vmem:[%s1 + $0xd4] sm:$0xff]
  %v53 = vld [vmem:[%s1 + $0xdc] sm:$0xf]
  %v54 = vld [vmem:[%s1 + $0xe0] sm:$0xff]
  %v55 = vld [vmem:[%s1 + $0xe8] sm:$0xff]
  %v56 = vld [vmem:[%s1 + $0xf0] sm:$0xff]
  %v57 = vld [vmem:[%s1 + $0xf8] sm:$0xf]
  %v58 = vld [vmem:[%s1 + $0xfc] sm:$0xff]
  %v59 = vld [vmem:[%s1 + $0x104] sm:$0xff]
  %v60 = vld [vmem:[%s1 + $0x10c] sm:$0xff]
  %v61 = vld [vmem:[%s1 + $0x114] sm:$0xf]
  %v62 = vld [vmem:[%s1 + $0x118] sm:$0xff]
  %v63 = vld [vmem:[%s1 + $0x120] sm:$0xff]
  %v64 = vld [vmem:[%s1 + $0x128] sm:$0xff]
  %v65 = vld [vmem:[%s1 + $0x130] sm:$0xf]
  %v66 = vld [vmem:[%s1 + $0x134] sm:$0xff]
  %v67 = vld [vmem:[%s1 + $0x13c] sm:$0xff]
  %v68 = vld [vmem:[%s1 + $0x144] sm:$0xff]
  %v69 = vld [vmem:[%s1 + $0x14c] sm:$0xf]
  %v70 = vld [vmem:[%s1 + $0x150] sm:$0xff]
  %v71 = vld [vmem:[%s1 + $0x158] sm:$0xff]
  %v72 = vld [vmem:[%s1 + $0x160] sm:$0xff]
  %v73 = vld [vmem:[%s1 + $0x168] sm:$0xf]
  %v74 = vld [vmem:[%s1 + $0x16c] sm:$0xff]
  %v75 = vld [vmem:[%s1 + $0x174] sm:$0xff]
  %v76 = vld [vmem:[%s1 + $0x17c] sm:$0xff]
  %v77 = vld [vmem:[%s1 + $0x184] sm:$0xf]
  %v78 = vld [vmem:[%s1 + $0x188] sm:$0xff]
  %v79 = vld [vmem:[%s1 + $0x190] sm:$0xff]
  %v80 = vld [vmem:[%s1 + $0x198] sm:$0xff]
  %v81 = vld [vmem:[%s1 + $0x1a0] sm:$0xf]
  %v82 = vld [vmem:[%s1 + $0x1a4] sm:$0xff]
  %v83 = vld [vmem:[%s1 + $0x1ac] sm:$0xff]
  %v84 = vld [vmem:[%s1 + $0x1b4] sm:$0xff]
  %v85 = vld [vmem:[%s1 + $0x1bc] sm:$0xf]
  %v86 = vld [vmem:[%s1 + $0x1c0] sm:$0xff]
  %v87 = vld [vmem:[%s1 + $0x1c8] sm:$0xff]
  %v88 = vld [vmem:[%s1 + $0x1d0] sm:$0xff]
  %v89 = vld [vmem:[%s1 + $0x1d8] sm:$0xf]
  %v90 = vld [vmem:[%s1 + $0x1dc] sm:$0xff]
  %v91 = vld [vmem:[%s1 + $0x1e4] sm:$0xff]
  %v92 = vld [vmem:[%s1 + $0x1ec] sm:$0xff]
  %v93 = vld [vmem:[%s1 + $0x1f4] sm:$0xf]
  %v94 = vld [vmem:[%s1 + $0x1f8] sm:$0xff]
  %v95 = vld [vmem:[%s1 + $0x200] sm:$0xff]
  %v96 = vld [vmem:[%s1 + $0x208] sm:$0xff]
  %v97 = vld [vmem:[%s1 + $0x210] sm:$0xf]
  %v98 = vld [vmem:[%s1 + $0x214] sm:$0xff]
  %v99 = vld [vmem:[%s1 + $0x21c] sm:$0xff]
  %v100 = vld [vmem:[%s1 + $0x224] sm:$0xff]
  %v101 = vld [vmem:[%s1 + $0x22c] sm:$0xf]
  %v102 = vld [vmem:[%s1 + $0x230] sm:$0xff]
  %v103 = vld [vmem:[%s1 + $0x238] sm:$0xff]
  %v104 = vld [vmem:[%s1 + $0x240] sm:$0xff]
  %v105 = vld [vmem:[%s1 + $0x248] sm:$0xf]
  %v106 = vld [vmem:[%s1 + $0x24c] sm:$0xff]
  %v107 = vld [vmem:[%s1 + $0x254] sm:$0xff]
  %v108 = vld [vmem:[%s1 + $0x25c] sm:$0xff]
  %v109 = vld [vmem:[%s1 + $0x264] sm:$0xf]
  %v110 = vld [vmem:[%s1 + $0x268] sm:$0xff]
  %v111 = vld [vmem:[%s1 + $0x270] sm:$0xff]
  %v112 = vld [vmem:[%s1 + $0x278] sm:$0xff]
  %v113 = vld [vmem:[%s1 + $0x280] sm:$0xf]
  %v114 = vld [vmem:[%s1 + $0x284] sm:$0xff]
  %v115 = vld [vmem:[%s1 + $0x28c] sm:$0xff]
  %v116 = vld [vmem:[%s1 + $0x294] sm:$0xff]
  %v117 = vld [vmem:[%s1 + $0x29c] sm:$0xf]
  %v118 = vld [vmem:[%s1 + $0x2a0] sm:$0xff]
  %v119 = vld [vmem:[%s1 + $0x2a8] sm:$0xff]
  %v120 = vld [vmem:[%s1 + $0x2b0] sm:$0xff]
  %v121 = vld [vmem:[%s1 + $0x2b8] sm:$0xf]
  %v122 = vld [vmem:[%s1 + $0x2bc] sm:$0xff]
  %v123 = vld [vmem:[%s1 + $0x2c4] sm:$0xff]
  %v124 = vld [vmem:[%s1 + $0x2cc] sm:$0xff]
  %v125 = vld [vmem:[%s1 + $0x2d4] sm:$0xf]
  %v126 = vld [vmem:[%s1 + $0x2d8] sm:$0xff]
  %v127 = vld [vmem:[%s1 + $0x2e0] sm:$0xff]
  %v128 = vld [vmem:[%s1 + $0x2e8] sm:$0xff]
  %v129 = vld [vmem:[%s1 + $0x2f0] sm:$0xf]
  %v130 = vld [vmem:[%s1 + $0x2f4] sm:$0xff]
  %v131 = vld [vmem:[%s1 + $0x2fc] sm:$0xff]
  %v132 = vld [vmem:[%s1 + $0x304] sm:$0xff]
  %v133 = vld [vmem:[%s1 + $0x30c] sm:$0xf]
  %v134 = vld [vmem:[%s1 + $0x310] sm:$0xff]
  %v135 = vld [vmem:[%s1 + $0x318] sm:$0xff]
  %v136 = vld [vmem:[%s1 + $0x320] sm:$0xff]
  %v137 = vld [vmem:[%s1 + $0x328] sm:$0xf]
  %v138 = vld [vmem:[%s1 + $0x32c] sm:$0xff]
  %v139 = vld [vmem:[%s1 + $0x334] sm:$0xff]
  %v140 = vld [vmem:[%s1 + $0x33c] sm:$0xff]
  %v141 = vld [vmem:[%s1 + $0x344] sm:$0xf]
  %v142 = vld [vmem:[%s1 + $0x348] sm:$0xff]
  %v143 = vld [vmem:[%s1 + $0x350] sm:$0xff]
  %v144 = vld [vmem:[%s1 + $0x358] sm:$0xff]
  %v145 = vld [vmem:[%s1 + $0x360] sm:$0xf]
  %v146 = vld [vmem:[%s1 + $0x364] sm:$0xff]
  %v147 = vld [vmem:[%s1 + $0x36c] sm:$0xff]
  %v148 = vld [vmem:[%s1 + $0x374] sm:$0xff]
  %v149 = vld [vmem:[%s1 + $0x37c] sm:$0xf]
  %v151 = vunpack.c.l.b16 %v21
  %v152 = vunpack.c.h.b16 %v21
  %v153 = vpack.c.b16 %v151, %v151
  %v154 = vpack.c.b16 %v152, %v152
  %v285 = vunpack.c.l.b16 %v22
  %v286 = vunpack.c.h.b16 %v22
  %v287 = vunpack.c.l.b16 %v23
  %v288 = vunpack.c.h.b16 %v23
  %v289 = vunpack.c.l.b16 %v24
  %v290 = vunpack.c.h.b16 %v24
  %v291 = vunpack.c.l.b16 %v25
  %v292 = vunpack.c.l.b16 %v26
  %v293 = vunpack.c.h.b16 %v26
  %v294 = vunpack.c.l.b16 %v27
  %v295 = vunpack.c.h.b16 %v27
  %v296 = vunpack.c.l.b16 %v28
  %v297 = vunpack.c.h.b16 %v28
  %v298 = vunpack.c.l.b16 %v29
  %v299 = vunpack.c.l.b16 %v30
  %v300 = vunpack.c.h.b16 %v30
  %v301 = vunpack.c.l.b16 %v31
  %v302 = vunpack.c.h.b16 %v31
  %v303 = vunpack.c.l.b16 %v32
  %v304 = vunpack.c.h.b16 %v32
  %v305 = vunpack.c.l.b16 %v33
  %v306 = vunpack.c.l.b16 %v34
  %v307 = vunpack.c.h.b16 %v34
  %v308 = vunpack.c.l.b16 %v35
  %v309 = vunpack.c.h.b16 %v35
  %v310 = vunpack.c.l.b16 %v36
  %v311 = vunpack.c.h.b16 %v36
  %v312 = vunpack.c.l.b16 %v37
  %v313 = vunpack.c.l.b16 %v38
  %v314 = vunpack.c.h.b16 %v38
  %v315 = vunpack.c.l.b16 %v39
  %v316 = vunpack.c.h.b16 %v39
  %v317 = vunpack.c.l.b16 %v40
  %v318 = vunpack.c.h.b16 %v40
  %v319 = vunpack.c.l.b16 %v41
  %v320 = vunpack.c.l.b16 %v42
  %v321 = vunpack.c.h.b16 %v42
  %v322 = vunpack.c.l.b16 %v43
  %v323 = vunpack.c.h.b16 %v43
  %v324 = vunpack.c.l.b16 %v44
  %v325 = vunpack.c.h.b16 %v44
  %v326 = vunpack.c.l.b16 %v45
  %v327 = vunpack.c.l.b16 %v46
  %v328 = vunpack.c.h.b16 %v46
  %v329 = vunpack.c.l.b16 %v47
  %v330 = vunpack.c.h.b16 %v47
  %v331 = vunpack.c.l.b16 %v48
  %v332 = vunpack.c.h.b16 %v48
  %v333 = vunpack.c.l.b16 %v49
  %v334 = vunpack.c.l.b16 %v50
  %v335 = vunpack.c.h.b16 %v50
  %v336 = vunpack.c.l.b16 %v51
  %v337 = vunpack.c.h.b16 %v51
  %v338 = vunpack.c.l.b16 %v52
  %v339 = vunpack.c.h.b16 %v52
  %v340 = vunpack.c.l.b16 %v53
  %v341 = vunpack.c.l.b16 %v54
  %v342 = vunpack.c.h.b16 %v54
  %v343 = vunpack.c.l.b16 %v55
  %v344 = vunpack.c.h.b16 %v55
  %v345 = vunpack.c.l.b16 %v56
  %v346 = vunpack.c.h.b16 %v56
  %v347 = vunpack.c.l.b16 %v57
  %v348 = vunpack.c.l.b16 %v58
  %v349 = vunpack.c.h.b16 %v58
  %v350 = vunpack.c.l.b16 %v59
  %v351 = vunpack.c.h.b16 %v59
  %v352 = vunpack.c.l.b16 %v60
  %v353 = vunpack.c.h.b16 %v60
  %v354 = vunpack.c.l.b16 %v61
  %v355 = vunpack.c.l.b16 %v62
  %v356 = vunpack.c.h.b16 %v62
  %v357 = vunpack.c.l.b16 %v63
  %v358 = vunpack.c.h.b16 %v63
  %v359 = vunpack.c.l.b16 %v64
  %v360 = vunpack.c.h.b16 %v64
  %v361 = vunpack.c.l.b16 %v65
  %v362 = vunpack.c.l.b16 %v66
  %v363 = vunpack.c.h.b16 %v66
  %v364 = vunpack.c.l.b16 %v67
  %v365 = vunpack.c.h.b16 %v67
  %v366 = vunpack.c.l.b16 %v68
  %v367 = vunpack.c.h.b16 %v68
  %v368 = vunpack.c.l.b16 %v69
  %v369 = vunpack.c.l.b16 %v70
  %v370 = vunpack.c.h.b16 %v70
  %v371 = vunpack.c.l.b16 %v71
  %v372 = vunpack.c.h.b16 %v71
  %v373 = vunpack.c.l.b16 %v72
  %v374 = vunpack.c.h.b16 %v72
  %v375 = vunpack.c.l.b16 %v73
  %v376 = vunpack.c.l.b16 %v74
  %v377 = vunpack.c.h.b16 %v74
  %v378 = vunpack.c.l.b16 %v75
  %v379 = vunpack.c.h.b16 %v75
  %v380 = vunpack.c.l.b16 %v76
  %v381 = vunpack.c.h.b16 %v76
  %v382 = vunpack.c.l.b16 %v77
  %v383 = vunpack.c.l.b16 %v78
  %v384 = vunpack.c.h.b16 %v78
  %v385 = vunpack.c.l.b16 %v79
  %v386 = vunpack.c.h.b16 %v79
  %v387 = vunpack.c.l.b16 %v80
  %v388 = vunpack.c.h.b16 %v80
  %v389 = vunpack.c.l.b16 %v81
  %v390 = vunpack.c.l.b16 %v82
  %v391 = vunpack.c.h.b16 %v82
  %v392 = vunpack.c.l.b16 %v83
  %v393 = vunpack.c.h.b16 %v83
  %v394 = vunpack.c.l.b16 %v84
  %v395 = vunpack.c.h.b16 %v84
  %v396 = vunpack.c.l.b16 %v85
  %v397 = vunpack.c.l.b16 %v86
  %v398 = vunpack.c.h.b16 %v86
  %v399 = vunpack.c.l.b16 %v87
  %v400 = vunpack.c.h.b16 %v87
  %v401 = vunpack.c.l.b16 %v88
  %v402 = vunpack.c.h.b16 %v88
  %v403 = vunpack.c.l.b16 %v89
  %v404 = vunpack.c.l.b16 %v90
  %v405 = vunpack.c.h.b16 %v90
  %v406 = vunpack.c.l.b16 %v91
  %v407 = vunpack.c.h.b16 %v91
  %v408 = vunpack.c.l.b16 %v92
  %v409 = vunpack.c.h.b16 %v92
  %v410 = vunpack.c.l.b16 %v93
  %v411 = vunpack.c.l.b16 %v94
  %v412 = vunpack.c.h.b16 %v94
  %v413 = vunpack.c.l.b16 %v95
  %v414 = vunpack.c.h.b16 %v95
  %v415 = vunpack.c.l.b16 %v96
  %v416 = vunpack.c.h.b16 %v96
  %v417 = vunpack.c.l.b16 %v97
  %v418 = vunpack.c.l.b16 %v98
  %v419 = vunpack.c.h.b16 %v98
  %v420 = vunpack.c.l.b16 %v99
  %v421 = vunpack.c.h.b16 %v99
  %v422 = vunpack.c.l.b16 %v100
  %v423 = vunpack.c.h.b16 %v100
  %v424 = vunpack.c.l.b16 %v101
  %v425 = vunpack.c.l.b16 %v102
  %v426 = vunpack.c.h.b16 %v102
  %v427 = vunpack.c.l.b16 %v103
  %v428 = vunpack.c.h.b16 %v103
  %v429 = vunpack.c.l.b16 %v104
  %v430 = vunpack.c.h.b16 %v104
  %v431 = vunpack.c.l.b16 %v105
  %v432 = vunpack.c.l.b16 %v106
  %v433 = vunpack.c.h.b16 %v106
  %v434 = vunpack.c.l.b16 %v107
  %v435 = vunpack.c.h.b16 %v107
  %v436 = vunpack.c.l.b16 %v108
  %v437 = vunpack.c.h.b16 %v108
  %v438 = vunpack.c.l.b16 %v109
  %v439 = vunpack.c.l.b16 %v110
  %v440 = vunpack.c.h.b16 %v110
  %v441 = vunpack.c.l.b16 %v111
  %v442 = vunpack.c.h.b16 %v111
  %v443 = vunpack.c.l.b16 %v112
  %v444 = vunpack.c.h.b16 %v112
  %v445 = vunpack.c.l.b16 %v113
  %v446 = vunpack.c.l.b16 %v114
  %v447 = vunpack.c.h.b16 %v114
  %v448 = vunpack.c.l.b16 %v115
  %v449 = vunpack.c.h.b16 %v115
  %v450 = vunpack.c.l.b16 %v116
  %v451 = vunpack.c.h.b16 %v116
  %v452 = vunpack.c.l.b16 %v117
  %v453 = vunpack.c.l.b16 %v118
  %v454 = vunpack.c.h.b16 %v118
  %v455 = vunpack.c.l.b16 %v119
  %v456 = vunpack.c.h.b16 %v119
  %v457 = vunpack.c.l.b16 %v120
  %v458 = vunpack.c.h.b16 %v120
  %v459 = vunpack.c.l.b16 %v121
  %v460 = vunpack.c.l.b16 %v122
  %v461 = vunpack.c.h.b16 %v122
  %v462 = vunpack.c.l.b16 %v123
  %v463 = vunpack.c.h.b16 %v123
  %v464 = vunpack.c.l.b16 %v124
  %v465 = vunpack.c.h.b16 %v124
  %v466 = vunpack.c.l.b16 %v125
  %v467 = vunpack.c.l.b16 %v126
  %v468 = vunpack.c.h.b16 %v126
  %v469 = vunpack.c.l.b16 %v127
  %v470 = vunpack.c.h.b16 %v127
  %v471 = vunpack.c.l.b16 %v128
  %v472 = vunpack.c.h.b16 %v128
  %v473 = vunpack.c.l.b16 %v129
  %v474 = vunpack.c.l.b16 %v130
  %v475 = vunpack.c.h.b16 %v130
  %v476 = vunpack.c.l.b16 %v131
  %v477 = vunpack.c.h.b16 %v131
  %v478 = vunpack.c.l.b16 %v132
  %v479 = vunpack.c.h.b16 %v132
  %v480 = vunpack.c.l.b16 %v133
  %v481 = vunpack.c.l.b16 %v134
  %v482 = vunpack.c.h.b16 %v134
  %v483 = vunpack.c.l.b16 %v135
  %v484 = vunpack.c.h.b16 %v135
  %v485 = vunpack.c.l.b16 %v136
  %v486 = vunpack.c.h.b16 %v136
  %v487 = vunpack.c.l.b16 %v137
  %v488 = vunpack.c.l.b16 %v138
  %v489 = vunpack.c.h.b16 %v138
  %v490 = vunpack.c.l.b16 %v139
  %v491 = vunpack.c.h.b16 %v139
  %v492 = vunpack.c.l.b16 %v140
  %v493 = vunpack.c.h.b16 %v140
  %v494 = vunpack.c.l.b16 %v141
  %v495 = vunpack.c.l.b16 %v142
  %v496 = vunpack.c.h.b16 %v142
  %v497 = vunpack.c.l.b16 %v143
  %v498 = vunpack.c.h.b16 %v143
  %v499 = vunpack.c.l.b16 %v144
  %v500 = vunpack.c.h.b16 %v144
  %v501 = vunpack.c.l.b16 %v145
  %v502 = vunpack.c.l.b16 %v146
  %v503 = vunpack.c.h.b16 %v146
  %v504 = vunpack.c.l.b16 %v147
  %v505 = vunpack.c.h.b16 %v147
  %v506 = vunpack.c.l.b16 %v148
  %v507 = vunpack.c.h.b16 %v148
  %v508 = vunpack.c.l.b16 %v149
  %v509 = vpack.c.b16 %v292, %v285
  %v510 = vpack.c.b16 %v293, %v286
  %v511 = vpack.c.b16 %v294, %v287
  %v512 = vpack.c.b16 %v295, %v288
  %v513 = vpack.c.b16 %v296, %v289
  %v514 = vpack.c.b16 %v297, %v290
  %v515 = vpack.c.b16 %v298, %v291
  %v516 = vpack.c.b16 %v306, %v299
  %v517 = vpack.c.b16 %v307, %v300
  %v518 = vpack.c.b16 %v308, %v301
  %v519 = vpack.c.b16 %v309, %v302
  %v520 = vpack.c.b16 %v310, %v303
  %v521 = vpack.c.b16 %v311, %v304
  %v522 = vpack.c.b16 %v312, %v305
  %v523 = vpack.c.b16 %v320, %v313
  %v524 = vpack.c.b16 %v321, %v314
  %v525 = vpack.c.b16 %v322, %v315
  %v526 = vpack.c.b16 %v323, %v316
  %v527 = vpack.c.b16 %v324, %v317
  %v528 = vpack.c.b16 %v325, %v318
  %v529 = vpack.c.b16 %v326, %v319
  %v530 = vpack.c.b16 %v334, %v327
  %v531 = vpack.c.b16 %v335, %v328
  %v532 = vpack.c.b16 %v336, %v329
  %v533 = vpack.c.b16 %v337, %v330
  %v534 = vpack.c.b16 %v338, %v331
  %v535 = vpack.c.b16 %v339, %v332
  %v536 = vpack.c.b16 %v340, %v333
  %v537 = vpack.c.b16 %v348, %v341
  %v538 = vpack.c.b16 %v349, %v342
  %v539 = vpack.c.b16 %v350, %v343
  %v540 = vpack.c.b16 %v351, %v344
  %v541 = vpack.c.b16 %v352, %v345
  %v542 = vpack.c.b16 %v353, %v346
  %v543 = vpack.c.b16 %v354, %v347
  %v544 = vpack.c.b16 %v362, %v355
  %v545 = vpack.c.b16 %v363, %v356
  %v546 = vpack.c.b16 %v364, %v357
  %v547 = vpack.c.b16 %v365, %v358
  %v548 = vpack.c.b16 %v366, %v359
  %v549 = vpack.c.b16 %v367, %v360
  %v550 = vpack.c.b16 %v368, %v361
  %v551 = vpack.c.b16 %v376, %v369
  %v552 = vpack.c.b16 %v377, %v370
  %v553 = vpack.c.b16 %v378, %v371
  %v554 = vpack.c.b16 %v379, %v372
  %v555 = vpack.c.b16 %v380, %v373
  %v556 = vpack.c.b16 %v381, %v374
  %v557 = vpack.c.b16 %v382, %v375
  %v558 = vpack.c.b16 %v390, %v383
  %v559 = vpack.c.b16 %v391, %v384
  %v560 = vpack.c.b16 %v392, %v385
  %v561 = vpack.c.b16 %v393, %v386
  %v562 = vpack.c.b16 %v394, %v387
  %v563 = vpack.c.b16 %v395, %v388
  %v564 = vpack.c.b16 %v396, %v389
  %v565 = vpack.c.b16 %v404, %v397
  %v566 = vpack.c.b16 %v405, %v398
  %v567 = vpack.c.b16 %v406, %v399
  %v568 = vpack.c.b16 %v407, %v400
  %v569 = vpack.c.b16 %v408, %v401
  %v570 = vpack.c.b16 %v409, %v402
  %v571 = vpack.c.b16 %v410, %v403
  %v572 = vpack.c.b16 %v418, %v411
  %v573 = vpack.c.b16 %v419, %v412
  %v574 = vpack.c.b16 %v420, %v413
  %v575 = vpack.c.b16 %v421, %v414
  %v576 = vpack.c.b16 %v422, %v415
  %v577 = vpack.c.b16 %v423, %v416
  %v578 = vpack.c.b16 %v424, %v417
  %v579 = vpack.c.b16 %v432, %v425
  %v580 = vpack.c.b16 %v433, %v426
  %v581 = vpack.c.b16 %v434, %v427
  %v582 = vpack.c.b16 %v435, %v428
  %v583 = vpack.c.b16 %v436, %v429
  %v584 = vpack.c.b16 %v437, %v430
  %v585 = vpack.c.b16 %v438, %v431
  %v586 = vpack.c.b16 %v446, %v439
  %v587 = vpack.c.b16 %v447, %v440
  %v588 = vpack.c.b16 %v448, %v441
  %v589 = vpack.c.b16 %v449, %v442
  %v590 = vpack.c.b16 %v450, %v443
  %v591 = vpack.c.b16 %v451, %v444
  %v592 = vpack.c.b16 %v452, %v445
  %v593 = vpack.c.b16 %v460, %v453
  %v594 = vpack.c.b16 %v461, %v454
  %v595 = vpack.c.b16 %v462, %v455
  %v596 = vpack.c.b16 %v463, %v456
  %v597 = vpack.c.b16 %v464, %v457
  %v598 = vpack.c.b16 %v465, %v458
  %v599 = vpack.c.b16 %v466, %v459
  %v600 = vpack.c.b16 %v474, %v467
  %v601 = vpack.c.b16 %v475, %v468
  %v602 = vpack.c.b16 %v476, %v469
  %v603 = vpack.c.b16 %v477, %v470
  %v604 = vpack.c.b16 %v478, %v471
  %v605 = vpack.c.b16 %v479, %v472
  %v606 = vpack.c.b16 %v480, %v473
  %v607 = vpack.c.b16 %v488, %v481
  %v608 = vpack.c.b16 %v489, %v482
  %v609 = vpack.c.b16 %v490, %v483
  %v610 = vpack.c.b16 %v491, %v484
  %v611 = vpack.c.b16 %v492, %v485
  %v612 = vpack.c.b16 %v493, %v486
  %v613 = vpack.c.b16 %v494, %v487
  %v614 = vpack.c.b16 %v502, %v495
  %v615 = vpack.c.b16 %v503, %v496
  %v616 = vpack.c.b16 %v504, %v497
  %v617 = vpack.c.b16 %v505, %v498
  %v618 = vpack.c.b16 %v506, %v499
  %v619 = vpack.c.b16 %v507, %v500
  %v620 = vpack.c.b16 %v508, %v501
  %733 = vmatprep.subr.bf16.mxu0 %v559
  %734 = vmatpush1.bf16.msra.mxu0 %v558
  %735 = vmatprep.subr.bf16.mxu0 %v552
  %736 = vmatpush1.bf16.msra.mxu0 %v551
  %737 = vmatprep.subr.bf16.mxu0 %v545
  %738 = vmatpush1.bf16.msra.mxu0 %v544
  %739 = vmatprep.subr.bf16.mxu0 %v538
  %740 = vmatpush1.bf16.msra.mxu0 %v537
  %741 = vmatprep.subr.bf16.mxu0 %v531
  %742 = vmatpush1.bf16.msra.mxu0 %v530
  %743 = vmatprep.subr.bf16.mxu0 %v524
  %744 = vmatpush1.bf16.msra.mxu0 %v523
  %745 = vmatprep.subr.bf16.mxu0 %v517
  %746 = vmatpush1.bf16.msra.mxu0 %v516
  %747 = vmatprep.subr.bf16.mxu0 %v510
  %748 = vmatpush1.bf16.msra.mxu0 %v509
  %749 = vmatprep.subr.bf16.mxu0 %v615
  %750 = vmatpush2.bf16.msra.mxu0 %v614
  %751 = vmatprep.subr.bf16.mxu0 %v608
  %752 = vmatpush2.bf16.msra.mxu0 %v607
  %753 = vmatprep.subr.bf16.mxu0 %v601
  %754 = vmatpush2.bf16.msra.mxu0 %v600
  %755 = vmatprep.subr.bf16.mxu0 %v594
  %756 = vmatpush2.bf16.msra.mxu0 %v593
  %757 = vmatprep.subr.bf16.mxu0 %v587
  %758 = vmatpush2.bf16.msra.mxu0 %v586
  %759 = vmatprep.subr.bf16.mxu0 %v580
  %760 = vmatpush2.bf16.msra.mxu0 %v579
  %761 = vmatprep.subr.bf16.mxu0 %v573
  %762 = vmatpush2.bf16.msra.mxu0 %v572
  %763 = vmatprep.subr.bf16.mxu0 %v566
  %764 = vmatpush2.bf16.msra.mxu0 %v565
  %765 = vmatprep.mubr.bf16.mxu0 %v154
  %766 = vmatmul.mubr.bf16.gmra.mxu0 %v153
  %v767 = vpop.f32.mrf.mxu0
  %v768 = vadd.f32 0.0, %v767
  %v769 = vpop.f32.mrf.mxu0
  %v770 = vadd.f32 0.0, %v769
  %v771 = vpop.f32.mrf.mxu0
  %v772 = vpop.f32.mrf.mxu0
  %773 = vdwg.mxu0
  %774 = vmatprep.subr.bf16.mxu0 %v561
  %775 = vmatpush1.bf16.msra.mxu0 %v560
  %776 = vmatprep.subr.bf16.mxu0 %v554
  %777 = vmatpush1.bf16.msra.mxu0 %v553
  %778 = vmatprep.subr.bf16.mxu0 %v547
  %779 = vmatpush1.bf16.msra.mxu0 %v546
  %780 = vmatprep.subr.bf16.mxu0 %v540
  %781 = vmatpush1.bf16.msra.mxu0 %v539
  %782 = vmatprep.subr.bf16.mxu0 %v533
  %783 = vmatpush1.bf16.msra.mxu0 %v532
  %784 = vmatprep.subr.bf16.mxu0 %v526
  %785 = vmatpush1.bf16.msra.mxu0 %v525
  %786 = vmatprep.subr.bf16.mxu0 %v519
  %787 = vmatpush1.bf16.msra.mxu0 %v518
  %788 = vmatprep.subr.bf16.mxu0 %v512
  %789 = vmatpush1.bf16.msra.mxu0 %v511
  %790 = vmatprep.subr.bf16.mxu0 %v617
  %791 = vmatpush2.bf16.msra.mxu0 %v616
  %792 = vmatprep.subr.bf16.mxu0 %v610
  %793 = vmatpush2.bf16.msra.mxu0 %v609
  %794 = vmatprep.subr.bf16.mxu0 %v603
  %795 = vmatpush2.bf16.msra.mxu0 %v602
  %796 = vmatprep.subr.bf16.mxu0 %v596
  %797 = vmatpush2.bf16.msra.mxu0 %v595
  %798 = vmatprep.subr.bf16.mxu0 %v589
  %799 = vmatpush2.bf16.msra.mxu0 %v588
  %800 = vmatprep.subr.bf16.mxu0 %v582
  %801 = vmatpush2.bf16.msra.mxu0 %v581
  %802 = vmatprep.subr.bf16.mxu0 %v575
  %803 = vmatpush2.bf16.msra.mxu0 %v574
  %804 = vmatprep.subr.bf16.mxu0 %v568
  %805 = vmatpush2.bf16.msra.mxu0 %v567
  %806 = vmatprep.mubr.bf16.mxu0 %v154
  %807 = vmatmul.mubr.bf16.gmra.mxu0 %v153
  %v808 = vpop.f32.mrf.mxu0
  %v809 = vadd.f32 0.0, %v808
  %v810 = vpop.f32.mrf.mxu0
  %v811 = vadd.f32 0.0, %v810
  %v812 = vpop.f32.mrf.mxu0
  %v813 = vpop.f32.mrf.mxu0
  %814 = vdwg.mxu0
  %815 = vmatprep.subr.bf16.mxu0 %v563
  %816 = vmatpush1.bf16.msra.mxu0 %v562
  %817 = vmatprep.subr.bf16.mxu0 %v556
  %818 = vmatpush1.bf16.msra.mxu0 %v555
  %819 = vmatprep.subr.bf16.mxu0 %v549
  %820 = vmatpush1.bf16.msra.mxu0 %v548
  %821 = vmatprep.subr.bf16.mxu0 %v542
  %822 = vmatpush1.bf16.msra.mxu0 %v541
  %823 = vmatprep.subr.bf16.mxu0 %v535
  %824 = vmatpush1.bf16.msra.mxu0 %v534
  %825 = vmatprep.subr.bf16.mxu0 %v528
  %826 = vmatpush1.bf16.msra.mxu0 %v527
  %827 = vmatprep.subr.bf16.mxu0 %v521
  %828 = vmatpush1.bf16.msra.mxu0 %v520
  %829 = vmatprep.subr.bf16.mxu0 %v514
  %830 = vmatpush1.bf16.msra.mxu0 %v513
  %831 = vmatprep.subr.bf16.mxu0 %v619
  %832 = vmatpush2.bf16.msra.mxu0 %v618
  %833 = vmatprep.subr.bf16.mxu0 %v612
  %834 = vmatpush2.bf16.msra.mxu0 %v611
  %835 = vmatprep.subr.bf16.mxu0 %v605
  %836 = vmatpush2.bf16.msra.mxu0 %v604
  %837 = vmatprep.subr.bf16.mxu0 %v598
  %838 = vmatpush2.bf16.msra.mxu0 %v597
  %839 = vmatprep.subr.bf16.mxu0 %v591
  %840 = vmatpush2.bf16.msra.mxu0 %v590
  %841 = vmatprep.subr.bf16.mxu0 %v584
  %842 = vmatpush2.bf16.msra.mxu0 %v583
  %843 = vmatprep.subr.bf16.mxu0 %v577
  %844 = vmatpush2.bf16.msra.mxu0 %v576
  %845 = vmatprep.subr.bf16.mxu0 %v570
  %846 = vmatpush2.bf16.msra.mxu0 %v569
  %847 = vmatprep.mubr.bf16.mxu0 %v154
  %848 = vmatmul.mubr.bf16.gmra.mxu0 %v153
  %v849 = vpop.f32.mrf.mxu0
  %v850 = vadd.f32 0.0, %v849
  %v851 = vpop.f32.mrf.mxu0
  %v852 = vadd.f32 0.0, %v851
  %v853 = vpop.f32.mrf.mxu0
  %v854 = vpop.f32.mrf.mxu0
  %855 = vdwg.mxu0
  %856 = vmatprep.subr.bf16.mxu0 0
  %857 = vmatpush1.bf16.msra.mxu0 %v564
  %858 = vmatprep.subr.bf16.mxu0 0
  %859 = vmatpush1.bf16.msra.mxu0 %v557
  %860 = vmatprep.subr.bf16.mxu0 0
  %861 = vmatpush1.bf16.msra.mxu0 %v550
  %862 = vmatprep.subr.bf16.mxu0 0
  %863 = vmatpush1.bf16.msra.mxu0 %v543
  %864 = vmatprep.subr.bf16.mxu0 0
  %865 = vmatpush1.bf16.msra.mxu0 %v536
  %866 = vmatprep.subr.bf16.mxu0 0
  %867 = vmatpush1.bf16.msra.mxu0 %v529
  %868 = vmatprep.subr.bf16.mxu0 0
  %869 = vmatpush1.bf16.msra.mxu0 %v522
  %870 = vmatprep.subr.bf16.mxu0 0
  %871 = vmatpush1.bf16.msra.mxu0 %v515
  %872 = vmatprep.subr.bf16.mxu0 0
  %873 = vmatpush2.bf16.msra.mxu0 %v620
  %874 = vmatprep.subr.bf16.mxu0 0
  %875 = vmatpush2.bf16.msra.mxu0 %v613
  %876 = vmatprep.subr.bf16.mxu0 0
  %877 = vmatpush2.bf16.msra.mxu0 %v606
  %878 = vmatprep.subr.bf16.mxu0 0
  %879 = vmatpush2.bf16.msra.mxu0 %v599
  %880 = vmatprep.subr.bf16.mxu0 0
  %881 = vmatpush2.bf16.msra.mxu0 %v592
  %882 = vmatprep.subr.bf16.mxu0 0
  %883 = vmatpush2.bf16.msra.mxu0 %v585
  %884 = vmatprep.subr.bf16.mxu0 0
  %885 = vmatpush2.bf16.msra.mxu0 %v578
  %886 = vmatprep.subr.bf16.mxu0 0
  %887 = vmatpush2.bf16.msra.mxu0 %v571
  %888 = vmatprep.mubr.bf16.mxu0 %v154
  %889 = vmatmul.mubr.bf16.gmra.mxu0 %v153
  %v890 = vpop.f32.mrf.mxu0
  %v891 = vadd.f32 0.0, %v890
  %v892 = vpop.f32.mrf.mxu0
  %v893 = vpop.f32.mrf.mxu0
  %v894 = vpop.f32.mrf.mxu0
  %895 = vdwg.mxu0
  %v896 = vmax.f32 %v768, 0.0
  %v897 = vmax.f32 %v770, 0.0
  %v898 = vmax.f32 %v809, 0.0
  %v899 = vmax.f32 %v811, 0.0
  %v900 = vmax.f32 %v850, 0.0
  %v901 = vmax.f32 %v852, 0.0
  %v902 = vmax.f32 %v891, 0.0
  %v903 = vpack.c.bf16 %v896, %v896
  %v904 = vpack.c.bf16 %v897, %v897
  %v905 = vpack.c.bf16 %v898, %v898
  %v906 = vpack.c.bf16 %v899, %v899
  %v907 = vpack.c.bf16 %v900, %v900
  %v908 = vpack.c.bf16 %v901, %v901
  %v909 = vpack.c.bf16 %v902, %v902
  %v910 = vld [vmem:[%s2] sm:$0xf]
  %v911 = vld [vmem:[%s2 + $0x4] sm:$0xf]
  %v912 = vld [vmem:[%s2 + $0x8] sm:$0xf]
  %v913 = vld [vmem:[%s2 + $0xc] sm:$0xf]
  %v914 = vld [vmem:[%s2 + $0x10] sm:$0xf]
  %v915 = vld [vmem:[%s2 + $0x14] sm:$0xf]
  %v916 = vld [vmem:[%s2 + $0x18] sm:$0xf]
  %v917 = vld [vmem:[%s2 + $0x1c] sm:$0xf]
  %v918 = vld [vmem:[%s2 + $0x20] sm:$0xf]
  %v919 = vld [vmem:[%s2 + $0x24] sm:$0xf]
  %v920 = vld [vmem:[%s2 + $0x28] sm:$0xf]
  %v921 = vld [vmem:[%s2 + $0x2c] sm:$0xf]
  %v922 = vld [vmem:[%s2 + $0x30] sm:$0xf]
  %v923 = vld [vmem:[%s2 + $0x34] sm:$0xf]
  %v924 = vld [vmem:[%s2 + $0x38] sm:$0xf]
  %v925 = vld [vmem:[%s2 + $0x3c] sm:$0xf]
  %v926 = vld [vmem:[%s2 + $0x40] sm:$0xf]
  %v927 = vld [vmem:[%s2 + $0x44] sm:$0xf]
  %v928 = vld [vmem:[%s2 + $0x48] sm:$0xf]
  %v929 = vld [vmem:[%s2 + $0x4c] sm:$0xf]
  %v930 = vld [vmem:[%s2 + $0x50] sm:$0xf]
  %v931 = vld [vmem:[%s2 + $0x54] sm:$0xf]
  %v932 = vld [vmem:[%s2 + $0x58] sm:$0xf]
  %v933 = vld [vmem:[%s2 + $0x5c] sm:$0xf]
  %v934 = vld [vmem:[%s2 + $0x60] sm:$0xf]
  %v935 = vld [vmem:[%s2 + $0x64] sm:$0xf]
  %v936 = vld [vmem:[%s2 + $0x68] sm:$0xf]
  %v937 = vld [vmem:[%s2 + $0x6c] sm:$0xf]
  %v938 = vld [vmem:[%s2 + $0x70] sm:$0xf]
  %v939 = vld [vmem:[%s2 + $0x74] sm:$0xf]
  %v940 = vld [vmem:[%s2 + $0x78] sm:$0xf]
  %v941 = vld [vmem:[%s2 + $0x7c] sm:$0xf]
  %v942 = vld [vmem:[%s2 + $0x80] sm:$0xf]
  %v943 = vld [vmem:[%s2 + $0x84] sm:$0xf]
  %v944 = vld [vmem:[%s2 + $0x88] sm:$0xf]
  %v945 = vld [vmem:[%s2 + $0x8c] sm:$0xf]
  %v946 = vld [vmem:[%s2 + $0x90] sm:$0xf]
  %v947 = vld [vmem:[%s2 + $0x94] sm:$0xf]
  %v948 = vld [vmem:[%s2 + $0x98] sm:$0xf]
  %v949 = vld [vmem:[%s2 + $0x9c] sm:$0xf]
  %v950 = vld [vmem:[%s2 + $0xa0] sm:$0xf]
  %v951 = vld [vmem:[%s2 + $0xa4] sm:$0xf]
  %v952 = vld [vmem:[%s2 + $0xa8] sm:$0xf]
  %v953 = vld [vmem:[%s2 + $0xac] sm:$0xf]
  %v954 = vld [vmem:[%s2 + $0xb0] sm:$0xf]
  %v955 = vld [vmem:[%s2 + $0xb4] sm:$0xf]
  %v956 = vld [vmem:[%s2 + $0xb8] sm:$0xf]
  %v957 = vld [vmem:[%s2 + $0xbc] sm:$0xf]
  %v958 = vld [vmem:[%s2 + $0xc0] sm:$0xf]
  %v959 = vld [vmem:[%s2 + $0xc4] sm:$0xf]
  %v960 = vld [vmem:[%s2 + $0xc8] sm:$0xf]
  %v961 = vld [vmem:[%s2 + $0xcc] sm:$0xf]
  %v962 = vld [vmem:[%s2 + $0xd0] sm:$0xf]
  %v963 = vld [vmem:[%s2 + $0xd4] sm:$0xf]
  %v964 = vld [vmem:[%s2 + $0xd8] sm:$0xf]
  %v965 = vld [vmem:[%s2 + $0xdc] sm:$0xf]
  %v966 = vld [vmem:[%s2 + $0xe0] sm:$0xf]
  %v967 = vld [vmem:[%s2 + $0xe4] sm:$0xf]
  %v968 = vld [vmem:[%s2 + $0xe8] sm:$0xf]
  %v969 = vld [vmem:[%s2 + $0xec] sm:$0xf]
  %v970 = vld [vmem:[%s2 + $0xf0] sm:$0xf]
  %v971 = vld [vmem:[%s2 + $0xf4] sm:$0xf]
  %v972 = vld [vmem:[%s2 + $0xf8] sm:$0xf]
  %v973 = vld [vmem:[%s2 + $0xfc] sm:$0xf]
  %v974 = vld [vmem:[%s2 + $0x100] sm:$0xf]
  %v975 = vld [vmem:[%s2 + $0x104] sm:$0xf]
  %v976 = vld [vmem:[%s2 + $0x108] sm:$0xf]
  %v977 = vld [vmem:[%s2 + $0x10c] sm:$0xf]
  %v978 = vld [vmem:[%s2 + $0x110] sm:$0xf]
  %v979 = vld [vmem:[%s2 + $0x114] sm:$0xf]
  %v980 = vld [vmem:[%s2 + $0x118] sm:$0xf]
  %v981 = vld [vmem:[%s2 + $0x11c] sm:$0xf]
  %v982 = vld [vmem:[%s2 + $0x120] sm:$0xf]
  %v983 = vld [vmem:[%s2 + $0x124] sm:$0xf]
  %v984 = vld [vmem:[%s2 + $0x128] sm:$0xf]
  %v985 = vld [vmem:[%s2 + $0x12c] sm:$0xf]
  %v986 = vld [vmem:[%s2 + $0x130] sm:$0xf]
  %v987 = vld [vmem:[%s2 + $0x134] sm:$0xf]
  %v988 = vld [vmem:[%s2 + $0x138] sm:$0xf]
  %v989 = vld [vmem:[%s2 + $0x13c] sm:$0xf]
  %v990 = vld [vmem:[%s2 + $0x140] sm:$0xf]
  %v991 = vld [vmem:[%s2 + $0x144] sm:$0xf]
  %v992 = vld [vmem:[%s2 + $0x148] sm:$0xf]
  %v993 = vld [vmem:[%s2 + $0x14c] sm:$0xf]
  %v994 = vld [vmem:[%s2 + $0x150] sm:$0xf]
  %v995 = vld [vmem:[%s2 + $0x154] sm:$0xf]
  %v996 = vld [vmem:[%s2 + $0x158] sm:$0xf]
  %v997 = vld [vmem:[%s2 + $0x15c] sm:$0xf]
  %v998 = vld [vmem:[%s2 + $0x160] sm:$0xf]
  %v999 = vld [vmem:[%s2 + $0x164] sm:$0xf]
  %v1000 = vld [vmem:[%s2 + $0x168] sm:$0xf]
  %v1001 = vld [vmem:[%s2 + $0x16c] sm:$0xf]
  %v1002 = vld [vmem:[%s2 + $0x170] sm:$0xf]
  %v1003 = vld [vmem:[%s2 + $0x174] sm:$0xf]
  %v1004 = vld [vmem:[%s2 + $0x178] sm:$0xf]
  %v1005 = vld [vmem:[%s2 + $0x17c] sm:$0xf]
  %v1006 = vld [vmem:[%s2 + $0x180] sm:$0xf]
  %v1007 = vld [vmem:[%s2 + $0x184] sm:$0xf]
  %v1008 = vld [vmem:[%s2 + $0x188] sm:$0xf]
  %v1009 = vld [vmem:[%s2 + $0x18c] sm:$0xf]
  %v1010 = vld [vmem:[%s2 + $0x190] sm:$0xf]
  %v1011 = vld [vmem:[%s2 + $0x194] sm:$0xf]
  %v1012 = vld [vmem:[%s2 + $0x198] sm:$0xf]
  %v1013 = vld [vmem:[%s2 + $0x19c] sm:$0xf]
  %v1014 = vld [vmem:[%s2 + $0x1a0] sm:$0xf]
  %v1015 = vld [vmem:[%s2 + $0x1a4] sm:$0xf]
  %v1016 = vld [vmem:[%s2 + $0x1a8] sm:$0xf]
  %v1017 = vld [vmem:[%s2 + $0x1ac] sm:$0xf]
  %v1018 = vld [vmem:[%s4] sm:$0x1]
  %v1019 = vlaneseq
  %v1020 = vshrl.u32 %v1019, 7
  %v1021 = vsub.s32 0, %v1020
  %v1022 = vrot.slane %v1018, %v1021
  %v1131 = vunpack.c.l.b16 %v910
  %v1132 = vunpack.c.l.b16 %v911
  %v1133 = vunpack.c.l.b16 %v912
  %v1134 = vunpack.c.l.b16 %v913
  %v1135 = vunpack.c.l.b16 %v914
  %v1136 = vunpack.c.l.b16 %v915
  %v1137 = vunpack.c.l.b16 %v916
  %v1138 = vunpack.c.l.b16 %v917
  %v1139 = vunpack.c.l.b16 %v918
  %v1140 = vunpack.c.l.b16 %v919
  %v1141 = vunpack.c.l.b16 %v920
  %v1142 = vunpack.c.l.b16 %v921
  %v1143 = vunpack.c.l.b16 %v922
  %v1144 = vunpack.c.l.b16 %v923
  %v1145 = vunpack.c.l.b16 %v924
  %v1146 = vunpack.c.l.b16 %v925
  %v1147 = vunpack.c.l.b16 %v926
  %v1148 = vunpack.c.l.b16 %v927
  %v1149 = vunpack.c.l.b16 %v928
  %v1150 = vunpack.c.l.b16 %v929
  %v1151 = vunpack.c.l.b16 %v930
  %v1152 = vunpack.c.l.b16 %v931
  %v1153 = vunpack.c.l.b16 %v932
  %v1154 = vunpack.c.l.b16 %v933
  %v1155 = vunpack.c.l.b16 %v934
  %v1156 = vunpack.c.l.b16 %v935
  %v1157 = vunpack.c.l.b16 %v936
  %v1158 = vunpack.c.l.b16 %v937
  %v1159 = vunpack.c.l.b16 %v938
  %v1160 = vunpack.c.l.b16 %v939
  %v1161 = vunpack.c.l.b16 %v940
  %v1162 = vunpack.c.l.b16 %v941
  %v1163 = vunpack.c.l.b16 %v942
  %v1164 = vunpack.c.l.b16 %v943
  %v1165 = vunpack.c.l.b16 %v944
  %v1166 = vunpack.c.l.b16 %v945
  %v1167 = vunpack.c.l.b16 %v946
  %v1168 = vunpack.c.l.b16 %v947
  %v1169 = vunpack.c.l.b16 %v948
  %v1170 = vunpack.c.l.b16 %v949
  %v1171 = vunpack.c.l.b16 %v950
  %v1172 = vunpack.c.l.b16 %v951
  %v1173 = vunpack.c.l.b16 %v952
  %v1174 = vunpack.c.l.b16 %v953
  %v1175 = vunpack.c.l.b16 %v954
  %v1176 = vunpack.c.l.b16 %v955
  %v1177 = vunpack.c.l.b16 %v956
  %v1178 = vunpack.c.l.b16 %v957
  %v1179 = vunpack.c.l.b16 %v958
  %v1180 = vunpack.c.l.b16 %v959
  %v1181 = vunpack.c.l.b16 %v960
  %v1182 = vunpack.c.l.b16 %v961
  %v1183 = vunpack.c.l.b16 %v962
  %v1184 = vunpack.c.l.b16 %v963
  %v1185 = vunpack.c.l.b16 %v964
  %v1186 = vunpack.c.l.b16 %v965
  %v1187 = vunpack.c.l.b16 %v966
  %v1188 = vunpack.c.l.b16 %v967
  %v1189 = vunpack.c.l.b16 %v968
  %v1190 = vunpack.c.l.b16 %v969
  %v1191 = vunpack.c.l.b16 %v970
  %v1192 = vunpack.c.l.b16 %v971
  %v1193 = vunpack.c.l.b16 %v972
  %v1194 = vunpack.c.l.b16 %v973
  %v1195 = vunpack.c.l.b16 %v974
  %v1196 = vunpack.c.l.b16 %v975
  %v1197 = vunpack.c.l.b16 %v976
  %v1198 = vunpack.c.l.b16 %v977
  %v1199 = vunpack.c.l.b16 %v978
  %v1200 = vunpack.c.l.b16 %v979
  %v1201 = vunpack.c.l.b16 %v980
  %v1202 = vunpack.c.l.b16 %v981
  %v1203 = vunpack.c.l.b16 %v982
  %v1204 = vunpack.c.l.b16 %v983
  %v1205 = vunpack.c.l.b16 %v984
  %v1206 = vunpack.c.l.b16 %v985
  %v1207 = vunpack.c.l.b16 %v986
  %v1208 = vunpack.c.l.b16 %v987
  %v1209 = vunpack.c.l.b16 %v988
  %v1210 = vunpack.c.l.b16 %v989
  %v1211 = vunpack.c.l.b16 %v990
  %v1212 = vunpack.c.l.b16 %v991
  %v1213 = vunpack.c.l.b16 %v992
  %v1214 = vunpack.c.l.b16 %v993
  %v1215 = vunpack.c.l.b16 %v994
  %v1216 = vunpack.c.l.b16 %v995
  %v1217 = vunpack.c.l.b16 %v996
  %v1218 = vunpack.c.l.b16 %v997
  %v1219 = vunpack.c.l.b16 %v998
  %v1220 = vunpack.c.l.b16 %v999
  %v1221 = vunpack.c.l.b16 %v1000
  %v1222 = vunpack.c.l.b16 %v1001
  %v1223 = vunpack.c.l.b16 %v1002
  %v1224 = vunpack.c.l.b16 %v1003
  %v1225 = vunpack.c.l.b16 %v1004
  %v1226 = vunpack.c.l.b16 %v1005
  %v1227 = vunpack.c.l.b16 %v1006
  %v1228 = vunpack.c.l.b16 %v1007
  %v1229 = vunpack.c.l.b16 %v1008
  %v1230 = vunpack.c.l.b16 %v1009
  %v1231 = vunpack.c.l.b16 %v1010
  %v1232 = vunpack.c.l.b16 %v1011
  %v1233 = vunpack.c.l.b16 %v1012
  %v1234 = vunpack.c.l.b16 %v1013
  %v1235 = vunpack.c.l.b16 %v1014
  %v1236 = vunpack.c.l.b16 %v1015
  %v1237 = vunpack.c.l.b16 %v1016
  %v1238 = vunpack.c.l.b16 %v1017
  %v1239 = vpack.c.b16 %v1132, %v1131
  %v1240 = vpack.c.b16 %v1134, %v1133
  %v1241 = vpack.c.b16 %v1136, %v1135
  %v1242 = vpack.c.b16 %v1138, %v1137
  %v1243 = vpack.c.b16 %v1140, %v1139
  %v1244 = vpack.c.b16 %v1142, %v1141
  %v1245 = vpack.c.b16 %v1144, %v1143
  %v1246 = vpack.c.b16 %v1146, %v1145
  %v1247 = vpack.c.b16 %v1148, %v1147
  %v1248 = vpack.c.b16 %v1150, %v1149
  %v1249 = vpack.c.b16 %v1152, %v1151
  %v1250 = vpack.c.b16 %v1154, %v1153
  %v1251 = vpack.c.b16 %v1156, %v1155
  %v1252 = vpack.c.b16 %v1158, %v1157
  %v1253 = vpack.c.b16 %v1160, %v1159
  %v1254 = vpack.c.b16 %v1162, %v1161
  %v1255 = vpack.c.b16 %v1164, %v1163
  %v1256 = vpack.c.b16 %v1166, %v1165
  %v1257 = vpack.c.b16 %v1168, %v1167
  %v1258 = vpack.c.b16 %v1170, %v1169
  %v1259 = vpack.c.b16 %v1172, %v1171
  %v1260 = vpack.c.b16 %v1174, %v1173
  %v1261 = vpack.c.b16 %v1176, %v1175
  %v1262 = vpack.c.b16 %v1178, %v1177
  %v1263 = vpack.c.b16 %v1180, %v1179
  %v1264 = vpack.c.b16 %v1182, %v1181
  %v1265 = vpack.c.b16 %v1184, %v1183
  %v1266 = vpack.c.b16 %v1186, %v1185
  %v1267 = vpack.c.b16 %v1188, %v1187
  %v1268 = vpack.c.b16 %v1190, %v1189
  %v1269 = vpack.c.b16 %v1192, %v1191
  %v1270 = vpack.c.b16 %v1194, %v1193
  %v1271 = vpack.c.b16 %v1196, %v1195
  %v1272 = vpack.c.b16 %v1198, %v1197
  %v1273 = vpack.c.b16 %v1200, %v1199
  %v1274 = vpack.c.b16 %v1202, %v1201
  %v1275 = vpack.c.b16 %v1204, %v1203
  %v1276 = vpack.c.b16 %v1206, %v1205
  %v1277 = vpack.c.b16 %v1208, %v1207
  %v1278 = vpack.c.b16 %v1210, %v1209
  %v1279 = vpack.c.b16 %v1212, %v1211
  %v1280 = vpack.c.b16 %v1214, %v1213
  %v1281 = vpack.c.b16 %v1216, %v1215
  %v1282 = vpack.c.b16 %v1218, %v1217
  %v1283 = vpack.c.b16 %v1220, %v1219
  %v1284 = vpack.c.b16 %v1222, %v1221
  %v1285 = vpack.c.b16 %v1224, %v1223
  %v1286 = vpack.c.b16 %v1226, %v1225
  %v1287 = vpack.c.b16 %v1228, %v1227
  %v1288 = vpack.c.b16 %v1230, %v1229
  %v1289 = vpack.c.b16 %v1232, %v1231
  %v1290 = vpack.c.b16 %v1234, %v1233
  %v1291 = vpack.c.b16 %v1236, %v1235
  %v1292 = vpack.c.b16 %v1238, %v1237
  %vm1347 = vcmask 785408
  %v1349 = vsel %vm1347, %v909, 0
  %1351 = vmatprep.subr.bf16.mxu0 0
  %1352 = vmatpush1.bf16.msra.mxu0 %v1246
  %1353 = vmatprep.subr.bf16.mxu0 0
  %1354 = vmatpush1.bf16.msra.mxu0 %v1245
  %1355 = vmatprep.subr.bf16.mxu0 0
  %1356 = vmatpush1.bf16.msra.mxu0 %v1244
  %1357 = vmatprep.subr.bf16.mxu0 0
  %1358 = vmatpush1.bf16.msra.mxu0 %v1243
  %1359 = vmatprep.subr.bf16.mxu0 0
  %1360 = vmatpush1.bf16.msra.mxu0 %v1242
  %1361 = vmatprep.subr.bf16.mxu0 0
  %1362 = vmatpush1.bf16.msra.mxu0 %v1241
  %1363 = vmatprep.subr.bf16.mxu0 0
  %1364 = vmatpush1.bf16.msra.mxu0 %v1240
  %1365 = vmatprep.subr.bf16.mxu0 0
  %1366 = vmatpush1.bf16.msra.mxu0 %v1239
  %1367 = vmatprep.subr.bf16.mxu0 0
  %1368 = vmatpush2.bf16.msra.mxu0 %v1254
  %1369 = vmatprep.subr.bf16.mxu0 0
  %1370 = vmatpush2.bf16.msra.mxu0 %v1253
  %1371 = vmatprep.subr.bf16.mxu0 0
  %1372 = vmatpush2.bf16.msra.mxu0 %v1252
  %1373 = vmatprep.subr.bf16.mxu0 0
  %1374 = vmatpush2.bf16.msra.mxu0 %v1251
  %1375 = vmatprep.subr.bf16.mxu0 0
  %1376 = vmatpush2.bf16.msra.mxu0 %v1250
  %1377 = vmatprep.subr.bf16.mxu0 0
  %1378 = vmatpush2.bf16.msra.mxu0 %v1249
  %1379 = vmatprep.subr.bf16.mxu0 0
  %1380 = vmatpush2.bf16.msra.mxu0 %v1248
  %1381 = vmatprep.subr.bf16.mxu0 0
  %1382 = vmatpush2.bf16.msra.mxu0 %v1247
  %1383 = vmatprep.mubr.bf16.mxu0 %v904
  %1384 = vmatmul.mubr.bf16.gmra.mxu0 %v903
  %v1385 = vpop.f32.mrf.mxu0
  %v1386 = vadd.f32 %v1022, %v1385
  %v1387 = vpop.f32.mrf.mxu0
  %v1388 = vpop.f32.mrf.mxu0
  %v1389 = vpop.f32.mrf.mxu0
  %1390 = vdwg.mxu0
  %1391 = vmatprep.subr.bf16.mxu0 0
  %1392 = vmatpush1.bf16.msra.mxu0 %v1262
  %1393 = vmatprep.subr.bf16.mxu0 0
  %1394 = vmatpush1.bf16.msra.mxu0 %v1261
  %1395 = vmatprep.subr.bf16.mxu0 0
  %1396 = vmatpush1.bf16.msra.mxu0 %v1260
  %1397 = vmatprep.subr.bf16.mxu0 0
  %1398 = vmatpush1.bf16.msra.mxu0 %v1259
  %1399 = vmatprep.subr.bf16.mxu0 0
  %1400 = vmatpush1.bf16.msra.mxu0 %v1258
  %1401 = vmatprep.subr.bf16.mxu0 0
  %1402 = vmatpush1.bf16.msra.mxu0 %v1257
  %1403 = vmatprep.subr.bf16.mxu0 0
  %1404 = vmatpush1.bf16.msra.mxu0 %v1256
  %1405 = vmatprep.subr.bf16.mxu0 0
  %1406 = vmatpush1.bf16.msra.mxu0 %v1255
  %1407 = vmatprep.subr.bf16.mxu0 0
  %1408 = vmatpush2.bf16.msra.mxu0 %v1270
  %1409 = vmatprep.subr.bf16.mxu0 0
  %1410 = vmatpush2.bf16.msra.mxu0 %v1269
  %1411 = vmatprep.subr.bf16.mxu0 0
  %1412 = vmatpush2.bf16.msra.mxu0 %v1268
  %1413 = vmatprep.subr.bf16.mxu0 0
  %1414 = vmatpush2.bf16.msra.mxu0 %v1267
  %1415 = vmatprep.subr.bf16.mxu0 0
  %1416 = vmatpush2.bf16.msra.mxu0 %v1266
  %1417 = vmatprep.subr.bf16.mxu0 0
  %1418 = vmatpush2.bf16.msra.mxu0 %v1265
  %1419 = vmatprep.subr.bf16.mxu0 0
  %1420 = vmatpush2.bf16.msra.mxu0 %v1264
  %1421 = vmatprep.subr.bf16.mxu0 0
  %1422 = vmatpush2.bf16.msra.mxu0 %v1263
  %1423 = vmatprep.mubr.bf16.mxu0 %v906
  %1424 = vmatmul.mubr.bf16.gmra.mxu0 %v905
  %v1425 = vpop.f32.mrf.mxu0
  %v1426 = vadd.f32 %v1386, %v1425
  %v1427 = vpop.f32.mrf.mxu0
  %v1428 = vpop.f32.mrf.mxu0
  %v1429 = vpop.f32.mrf.mxu0
  %1430 = vdwg.mxu0
  %1431 = vmatprep.subr.bf16.mxu0 0
  %1432 = vmatpush1.bf16.msra.mxu0 %v1278
  %1433 = vmatprep.subr.bf16.mxu0 0
  %1434 = vmatpush1.bf16.msra.mxu0 %v1277
  %1435 = vmatprep.subr.bf16.mxu0 0
  %1436 = vmatpush1.bf16.msra.mxu0 %v1276
  %1437 = vmatprep.subr.bf16.mxu0 0
  %1438 = vmatpush1.bf16.msra.mxu0 %v1275
  %1439 = vmatprep.subr.bf16.mxu0 0
  %1440 = vmatpush1.bf16.msra.mxu0 %v1274
  %1441 = vmatprep.subr.bf16.mxu0 0
  %1442 = vmatpush1.bf16.msra.mxu0 %v1273
  %1443 = vmatprep.subr.bf16.mxu0 0
  %1444 = vmatpush1.bf16.msra.mxu0 %v1272
  %1445 = vmatprep.subr.bf16.mxu0 0
  %1446 = vmatpush1.bf16.msra.mxu0 %v1271
  %1447 = vmatprep.subr.bf16.mxu0 0
  %1448 = vmatpush2.bf16.msra.mxu0 %v1286
  %1449 = vmatprep.subr.bf16.mxu0 0
  %1450 = vmatpush2.bf16.msra.mxu0 %v1285
  %1451 = vmatprep.subr.bf16.mxu0 0
  %1452 = vmatpush2.bf16.msra.mxu0 %v1284
  %1453 = vmatprep.subr.bf16.mxu0 0
  %1454 = vmatpush2.bf16.msra.mxu0 %v1283
  %1455 = vmatprep.subr.bf16.mxu0 0
  %1456 = vmatpush2.bf16.msra.mxu0 %v1282
  %1457 = vmatprep.subr.bf16.mxu0 0
  %1458 = vmatpush2.bf16.msra.mxu0 %v1281
  %1459 = vmatprep.subr.bf16.mxu0 0
  %1460 = vmatpush2.bf16.msra.mxu0 %v1280
  %1461 = vmatprep.subr.bf16.mxu0 0
  %1462 = vmatpush2.bf16.msra.mxu0 %v1279
  %1463 = vmatprep.mubr.bf16.mxu0 %v908
  %1464 = vmatmul.mubr.bf16.gmra.mxu0 %v907
  %v1465 = vpop.f32.mrf.mxu0
  %v1466 = vadd.f32 %v1426, %v1465
  %v1467 = vpop.f32.mrf.mxu0
  %v1468 = vpop.f32.mrf.mxu0
  %v1469 = vpop.f32.mrf.mxu0
  %1470 = vdwg.mxu0
  %1471 = vmatprep.subr.bf16.mxu0 0
  %1472 = vmatpush1.bf16.msra.mxu0 0
  %1473 = vmatprep.subr.bf16.mxu0 0
  %1474 = vmatpush1.bf16.msra.mxu0 0
  %1475 = vmatprep.subr.bf16.mxu0 0
  %1476 = vmatpush1.bf16.msra.mxu0 %v1292
  %1477 = vmatprep.subr.bf16.mxu0 0
  %1478 = vmatpush1.bf16.msra.mxu0 %v1291
  %1479 = vmatprep.subr.bf16.mxu0 0
  %1480 = vmatpush1.bf16.msra.mxu0 %v1290
  %1481 = vmatprep.subr.bf16.mxu0 0
  %1482 = vmatpush1.bf16.msra.mxu0 %v1289
  %1483 = vmatprep.subr.bf16.mxu0 0
  %1484 = vmatpush1.bf16.msra.mxu0 %v1288
  %1485 = vmatprep.subr.bf16.mxu0 0
  %1486 = vmatpush1.bf16.msra.mxu0 %v1287
  %1487 = vmatprep.subr.bf16.mxu0 0
  %1488 = vmatpush2.bf16.msra.mxu0 0
  %1489 = vmatprep.subr.bf16.mxu0 0
  %1490 = vmatpush2.bf16.msra.mxu0 0
  %1491 = vmatprep.subr.bf16.mxu0 0
  %1492 = vmatpush2.bf16.msra.mxu0 0
  %1493 = vmatprep.subr.bf16.mxu0 0
  %1494 = vmatpush2.bf16.msra.mxu0 0
  %1495 = vmatprep.subr.bf16.mxu0 0
  %1496 = vmatpush2.bf16.msra.mxu0 0
  %1497 = vmatprep.subr.bf16.mxu0 0
  %1498 = vmatpush2.bf16.msra.mxu0 0
  %1499 = vmatprep.subr.bf16.mxu0 0
  %1500 = vmatpush2.bf16.msra.mxu0 0
  %1501 = vmatprep.subr.bf16.mxu0 0
  %1502 = vmatpush2.bf16.msra.mxu0 0
  %1503 = vmatprep.mubr.bf16.mxu0 0
  %1504 = vmatmul.mubr.bf16.gmra.mxu0 %v1349
  %v1505 = vpop.f32.mrf.mxu0
  %v1506 = vadd.f32 %v1466, %v1505
  %v1507 = vpop.f32.mrf.mxu0
  %v1508 = vpop.f32.mrf.mxu0
  %v1509 = vpop.f32.mrf.mxu0
  %1510 = vdwg.mxu0
  %v1511 = vmax.f32 %v1506, 0.0
  %v1512 = vpack.c.bf16 %v1511, %v1511
  %v1513 = vld [vmem:[%s3] sm:$0xf]
  %v1514 = vld [vmem:[%s3 + $0x4] sm:$0xf]
  %v1515 = vld [vmem:[%s3 + $0x8] sm:$0xf]
  %v1516 = vld [vmem:[%s3 + $0xc] sm:$0xf]
  %v1517 = vld [vmem:[%s3 + $0x10] sm:$0xf]
  %v1518 = vld [vmem:[%s3 + $0x14] sm:$0xf]
  %v1519 = vld [vmem:[%s3 + $0x18] sm:$0xf]
  %v1520 = vld [vmem:[%s3 + $0x1c] sm:$0xf]
  %v1521 = vld [vmem:[%s3 + $0x20] sm:$0xf]
  %v1522 = vld [vmem:[%s3 + $0x24] sm:$0xf]
  %v1523 = vld [vmem:[%s3 + $0x28] sm:$0xf]
  %v1524 = vld [vmem:[%s3 + $0x2c] sm:$0xf]
  %v1525 = vld [vmem:[%s4 + $0x1] sm:$0x1]
  %v1526 = vlaneseq
  %v1527 = vshrl.u32 %v1526, 7
  %v1528 = vsub.s32 0, %v1527
  %v1529 = vrot.slane %v1525, %v1528
  %v1542 = vunpack.c.l.b16 %v1513
  %v1543 = vunpack.c.l.b16 %v1514
  %v1544 = vunpack.c.l.b16 %v1515
  %v1545 = vunpack.c.l.b16 %v1516
  %v1546 = vunpack.c.l.b16 %v1517
  %v1547 = vunpack.c.l.b16 %v1518
  %v1548 = vunpack.c.l.b16 %v1519
  %v1549 = vunpack.c.l.b16 %v1520
  %v1550 = vunpack.c.l.b16 %v1521
  %v1551 = vunpack.c.l.b16 %v1522
  %v1552 = vunpack.c.l.b16 %v1523
  %v1553 = vunpack.c.l.b16 %v1524
  %v1554 = vpack.c.b16 %v1543, %v1542
  %v1555 = vpack.c.b16 %v1545, %v1544
  %v1556 = vpack.c.b16 %v1547, %v1546
  %v1557 = vpack.c.b16 %v1549, %v1548
  %v1558 = vpack.c.b16 %v1551, %v1550
  %v1559 = vpack.c.b16 %v1553, %v1552
  %v1567 = vsel %vm1347, %v1512, 0
  %1569 = vmatprep.subr.bf16.mxu0 0
  %1570 = vmatpush1.bf16.msra.mxu0 0
  %1571 = vmatprep.subr.bf16.mxu0 0
  %1572 = vmatpush1.bf16.msra.mxu0 0
  %1573 = vmatprep.subr.bf16.mxu0 0
  %1574 = vmatpush1.bf16.msra.mxu0 %v1559
  %1575 = vmatprep.subr.bf16.mxu0 0
  %1576 = vmatpush1.bf16.msra.mxu0 %v1558
  %1577 = vmatprep.subr.bf16.mxu0 0
  %1578 = vmatpush1.bf16.msra.mxu0 %v1557
  %1579 = vmatprep.subr.bf16.mxu0 0
  %1580 = vmatpush1.bf16.msra.mxu0 %v1556
  %1581 = vmatprep.subr.bf16.mxu0 0
  %1582 = vmatpush1.bf16.msra.mxu0 %v1555
  %1583 = vmatprep.subr.bf16.mxu0 0
  %1584 = vmatpush1.bf16.msra.mxu0 %v1554
  %1585 = vmatprep.subr.bf16.mxu0 0
  %1586 = vmatpush2.bf16.msra.mxu0 0
  %1587 = vmatprep.subr.bf16.mxu0 0
  %1588 = vmatpush2.bf16.msra.mxu0 0
  %1589 = vmatprep.subr.bf16.mxu0 0
  %1590 = vmatpush2.bf16.msra.mxu0 0
  %1591 = vmatprep.subr.bf16.mxu0 0
  %1592 = vmatpush2.bf16.msra.mxu0 0
  %1593 = vmatprep.subr.bf16.mxu0 0
  %1594 = vmatpush2.bf16.msra.mxu0 0
  %1595 = vmatprep.subr.bf16.mxu0 0
  %1596 = vmatpush2.bf16.msra.mxu0 0
  %1597 = vmatprep.subr.bf16.mxu0 0
  %1598 = vmatpush2.bf16.msra.mxu0 0
  %1599 = vmatprep.subr.bf16.mxu0 0
  %1600 = vmatpush2.bf16.msra.mxu0 0
  %1601 = vmatprep.mubr.bf16.mxu0 0
  %1602 = vmatmul.mubr.bf16.gmra.mxu0 %v1567
  %v1603 = vpop.f32.mrf.mxu0
  %v1604 = vadd.f32 %v1529, %v1603
  %v1605 = vpop.f32.mrf.mxu0
  %v1606 = vpop.f32.mrf.mxu0
  %v1607 = vpop.f32.mrf.mxu0
  %1608 = vdwg.mxu0
  %v1609 = vmul.f32 %v1604, 5.656854
  %vm1610 = vcmask 261120
  %v1611 = vsel %vm1610, %v1609, 0.0
  %1612 = vadd.xlane.f32.xlu0 %v1611
  %v1613 = vpop.xlane.xlu0 %1612
  %v1614 = vrcp.pop 32.0
  %v1615 = vmul.f32 %v1613, %v1614
  %v1616 = vsub.f32 %v1609, %v1615
  %v1617 = vmul.f32 %v1616, %v1616
  %v1618 = vsel %vm1610, %v1617, 0.0
  %1619 = vadd.xlane.f32.xlu0 %v1618
  %v1620 = vpop.xlane.xlu0 %1619
  %v1621 = vmul.f32 %v1620, %v1614
  %v1622 = vadd.f32 %v1621, 1e-12
  %v1623 = vrsqrt.pop %v1622
  %v1624 = vmul.f32 %v1616, %v1623
  %v1625 = vld [vmem:[%s4 + $0x2] sm:$0x1]
  %v1626 = vlaneseq
  %v1627 = vshrl.u32 %v1626, 7
  %v1628 = vsub.s32 0, %v1627
  %v1629 = vrot.slane %v1625, %v1628
  %v1630 = vmul.f32 %v1624, %v1629
  %v1631 = vld [vmem:[%s4 + $0x3] sm:$0x1]
  %v1632 = vlaneseq
  %v1633 = vshrl.u32 %v1632, 7
  %v1634 = vsub.s32 0, %v1633
  %v1635 = vrot.slane %v1631, %v1634
  %v1636 = vadd.f32 %v1630, %v1635
  %1637 = vst.msk [vmem:[%s5] sm:$0xff] %vm1610, %v1636
  // Predicated region
  $region22: #{base_encoder_forward.1} parent=0 // pred_check
    _
  $region23: #{base_encoder_forward.1} parent=0 // pred_check_branch
    %1639 = sbr.rel (0) target = $region25
  $region24: #{base_encoder_forward.1} parent=0 // pred_region
    _
  $region25: #{base_encoder_forward.1} parent=0 // pred_fallthru
    _
  // Predicated region
  $region26: #{base_encoder_forward.1} parent=0 // pred_check
    _
  $region27: #{base_encoder_forward.1} parent=0 // pred_check_branch
    %1641 = sbr.rel (0) target = $region29
  $region28: #{base_encoder_forward.1} parent=0 // pred_region
    _
  $region29: #{base_encoder_forward.1} parent=0 // pred_fallthru
    _

</llo_original>
